<compile_context>
chip_gen: v7x
topology: tpu7x:2x2x1
jax: 0.10.0
libtpu: 0.0.40
codegen_flags: <defaults>
</compile_context>

<pallas_src>
import jax
import jax.numpy as jnp
from jax.experimental import pallas as pl
from jax.experimental.pallas import tpu as pltpu

# ---------------- model dimensions (synthetic, small) ----------------
BATCH   = 1024   # number of position pairs evaluated per call
TILE_B  = 256    # batch rows per grid step (>=128 v5e, >=256 v6e/v7x)
IN_DIM  = 128    # board-feature dim fed to ae.encode   (paper: 773)
AE_H    = 128    # encoder hidden dim                   (paper: 600/400/200)
LATENT  = 128    # encoder output dim                   (paper: 100)
SI_H1   = 128    # siamese hidden 1                     (paper: 400)
SI_H2   = 128    # siamese hidden 2                     (paper: 200/100)
OUT_DIM = 2      # win/lose logits                      (paper: 2)
OUT_PAD = 128    # lane-dense padded output width

assert BATCH % TILE_B == 0
assert TILE_B % 16 == 0   # bf16 sublane tile -> copy-free stack/split in-kernel

# Weight-stack slot indices (each slot is a 128x128 bf16 matrix).  si_w1 is
# passed separately as one contiguous (2*LATENT, SI_H1) operand.
W_AE1, W_AE2, W_SI2, W_SI3 = range(4)
N_WSLOTS = 4
# Bias-stack row indices (rows 5..7 of the (8,128) stack are zero padding).
B_AE1, B_AE2, B_SI1, B_SI2, B_SI3 = range(5)
N_BROWS = 8

# -------- generation-aware micro-choices (trace-time, no runtime branch) ----
_DEVICE_KIND = ""
try:
    _DEVICE_KIND = jax.devices()[0].device_kind.lower()
except Exception:
    pass
# v2/v3/v4/v5-class: 128x128 MXUs, no bf16 VALU -> split-K si1, f32 elementwise.
# v6e/v7x (and newer/unknown): K=256 fused si1, bf16 elementwise.
_OLD_GEN     = any(g in _DEVICE_KIND for g in ("v2", "v3", "v4", "v5"))
FUSE_SI1     = not _OLD_GEN
BF16_ELTWISE = not _OLD_GEN


def make_deepchess_kernel(fuse_si1: bool, bf16_eltwise: bool):
    """Fused forward: one stacked encoder pass + siamese head, per batch tile.

    x1_ref/x2_ref : (TILE_B, IN_DIM)      bf16
    w_ref         : (4, 128, 128)         bf16  packed weight stack
    si_w1_ref     : (2*LATENT, SI_H1)     bf16  kept whole for the K=256 path
    b_ref         : (8, 128)              f32   packed bias stack
    out_ref       : (TILE_B, OUT_PAD)     f32   logits live in lanes [0, OUT_DIM)
    """
    f32, bf16 = jnp.float32, jnp.bfloat16
    act_dt = bf16 if bf16_eltwise else f32

    def kernel(x1_ref, x2_ref, w_ref, si_w1_ref, b_ref, out_ref):
        def bias(i):
            # 2-D row load -> sublane broadcast (no 1-D re-broadcast).
            return b_ref[i:i + 1, :].astype(act_dt)

        def layer(a, w, bi):
            # MXU matmul with f32 accumulation; bias-add + ReLU in act_dt.
            y = jnp.dot(a, w, preferred_element_type=f32).astype(act_dt)
            return jnp.maximum(y + bias(bi), 0).astype(bf16)

        # ---- encoder: one pass over the sublane-stacked (2*TILE_B, IN) slab ----
        x = jnp.concatenate([x1_ref[...], x2_ref[...]], axis=0)        # bf16
        h = layer(x, w_ref[W_AE1], B_AE1)
        z = layer(h, w_ref[W_AE2], B_AE2)                              # (2T, L) bf16

        # TILE_B is a multiple of the sublane tile -> copy-free views.
        z1, z2 = z[:TILE_B], z[TILE_B:]

        # ---- siamese head ----
        if fuse_si1:
            # cat([z1, z2], 1) @ si_w1 as a single K=256 matmul (256-deep MXU).
            zz = jnp.concatenate([z1, z2], axis=1)                     # (T, 2L)
            s1 = jnp.dot(zz, si_w1_ref[...], preferred_element_type=f32)
        else:
            # 128x128-MXU chips: two K=128 matmuls + add.
            s1 = (jnp.dot(z1, si_w1_ref[:LATENT, :], preferred_element_type=f32)
                  + jnp.dot(z2, si_w1_ref[LATENT:, :], preferred_element_type=f32))
        h = jnp.maximum(s1.astype(act_dt) + bias(B_SI1), 0).astype(bf16)
        h = layer(h, w_ref[W_SI2], B_SI2)

        out = (jnp.dot(h, w_ref[W_SI3], preferred_element_type=f32)
               + b_ref[B_SI3:B_SI3 + 1, :])                            # f32
        out_ref[...] = out.astype(out_ref.dtype)                       # lane-dense

    return kernel


_KERNEL = make_deepchess_kernel(FUSE_SI1, BF16_ELTWISE)


def pack_params(p):
    """Coalesce the parameter tensors into weight stack + si_w1 + bias stack."""
    f32, bf16 = jnp.float32, jnp.bfloat16
    si_w3_pad = jnp.zeros((SI_H2, OUT_PAD), f32).at[:, :OUT_DIM].set(p["si_w3"])
    si_b3_pad = jnp.zeros((1, OUT_PAD), f32).at[:, :OUT_DIM].set(p["si_b3"])
    w_stack = jnp.stack([
        p["ae_w1"], p["ae_w2"], p["si_w2"], si_w3_pad,
    ]).astype(bf16)                                        # (4, 128, 128) bf16
    si_w1 = p["si_w1"].astype(bf16)                        # (256, 128) bf16, whole
    b_stack = jnp.concatenate([
        p["ae_b1"], p["ae_b2"], p["si_b1"], p["si_b2"], si_b3_pad,
        jnp.zeros((3, OUT_PAD), f32),                      # pad to 8 sublanes
    ], axis=0).astype(f32)                                 # (8, 128) f32
    return w_stack, si_w1, b_stack


@jax.jit
def deepchess_forward(x1, x2, w_stack, si_w1, b_stack):
    """Batch-tiled, weight-resident forward.  Inputs are bf16 (caller-side);
    output is the lane-padded (B, OUT_PAD) f32 slab (slice where consumed)."""
    n = x1.shape[0]
    grid = (n // TILE_B,)
    return pl.pallas_call(
        _KERNEL,
        out_shape=jax.ShapeDtypeStruct((n, OUT_PAD), jnp.float32),
        grid=grid,
        in_specs=[
            pl.BlockSpec((TILE_B, IN_DIM), lambda b: (b, 0)),          # x1 tile
            pl.BlockSpec((TILE_B, IN_DIM), lambda b: (b, 0)),          # x2 tile
            pl.BlockSpec((N_WSLOTS, 128, 128), lambda b: (0, 0, 0)),   # resident
            pl.BlockSpec((2 * LATENT, SI_H1), lambda b: (0, 0)),       # resident
            pl.BlockSpec((N_BROWS, OUT_PAD), lambda b: (0, 0)),        # resident
        ],
        out_specs=pl.BlockSpec((TILE_B, OUT_PAD), lambda b: (b, 0)),
        compiler_params=pltpu.CompilerParams(
            dimension_semantics=("parallel",)),   # v7x: batch tiles on both TCs
    )(x1, x2, w_stack, si_w1, b_stack)


def init_params(key):
    ks = jax.random.split(key, 10)

    def w(k, shape, scale=0.05):
        return (scale * jax.random.normal(k, shape)).astype(jnp.float32)

    return {
        # encoder (ae.encode): IN_DIM -> AE_H -> LATENT, ReLU after each
        "ae_w1": w(ks[0], (IN_DIM, AE_H)),
        "ae_b1": w(ks[1], (1, AE_H)),
        "ae_w2": w(ks[2], (AE_H, LATENT)),
        "ae_b2": w(ks[3], (1, LATENT)),
        # siamese head (si): 2*LATENT -> SI_H1 -> SI_H2 -> OUT_DIM
        "si_w1": w(ks[4], (2 * LATENT, SI_H1)),
        "si_b1": w(ks[5], (1, SI_H1)),
        "si_w2": w(ks[6], (SI_H1, SI_H2)),
        "si_b2": w(ks[7], (1, SI_H2)),
        "si_w3": w(ks[8], (SI_H2, OUT_DIM)),
        "si_b3": w(ks[9], (1, OUT_DIM)),
    }


def reference_forward(x1, x2, p):
    """Pure-JAX reference mirroring the PyTorch forward (bf16 matmul operands,
    f32 accumulation / elementwise)."""
    f32, bf16 = jnp.float32, jnp.bfloat16

    def mm(a, w):
        return jnp.dot(a.astype(bf16), w.astype(bf16), preferred_element_type=f32)

    def encode(x):
        h = jnp.maximum(mm(x, p["ae_w1"]) + p["ae_b1"], 0.0)
        return jnp.maximum(mm(h, p["ae_w2"]) + p["ae_b2"], 0.0)

    z = jnp.concatenate([encode(x1), encode(x2)], axis=1)
    h = jnp.maximum(mm(z, p["si_w1"]) + p["si_b1"], 0.0)
    h = jnp.maximum(mm(h, p["si_w2"]) + p["si_b2"], 0.0)
    return mm(h, p["si_w3"]) + p["si_b3"]


if __name__ == "__main__":
    key = jax.random.PRNGKey(0)
    k_p, k_x1, k_x2 = jax.random.split(key, 3)
    params = init_params(k_p)
    # Caller hands in bf16 board features (exact for 0/1 board planes); the
    # jitted hot path does no casts, concats or slices.
    x1 = jax.random.normal(k_x1, (BATCH, IN_DIM)).astype(jnp.bfloat16)
    x2 = jax.random.normal(k_x2, (BATCH, IN_DIM)).astype(jnp.bfloat16)

    w_stack, si_w1, b_stack = pack_params(params)
    out_pad = jax.block_until_ready(
        deepchess_forward(x1, x2, w_stack, si_w1, b_stack))
    out = out_pad[:, :OUT_DIM]            # consumer-side slice of padded lanes
    ref = reference_forward(x1, x2, params)

    assert out.shape == (BATCH, OUT_DIM), out.shape
    assert jnp.allclose(out, ref, atol=2e-2, rtol=5e-2), (
        float(jnp.max(jnp.abs(out - ref))))
    print("KERNEL_OK")
</pallas_src>

<mosaic_0001>
module attributes {stable_mosaic.version = 11 : i64} {
  func.func @kernel(%arg0: i32, %arg1: memref<256x128xbf16, #tpu.memory_space<vmem>>, %arg2: memref<256x128xbf16, #tpu.memory_space<vmem>>, %arg3: memref<4x128x128xbf16, #tpu.memory_space<vmem>>, %arg4: memref<256x128xbf16, #tpu.memory_space<vmem>>, %arg5: memref<8x128xf32, #tpu.memory_space<vmem>>, %arg6: memref<256x128xf32, #tpu.memory_space<vmem>>) attributes {dimension_semantics = [#tpu.dimension_semantics<parallel>], iteration_bounds = array<i64: 4>, scalar_prefetch = 0 : i64, scratch_operands = 0 : i64, tpu.core_type = #tpu.core_type<tc>, window_params = [{transform_indices = @transform_0, window_bounds = array<i64: 256, 128>}, {transform_indices = @transform_1, window_bounds = array<i64: 256, 128>}, {pipeline_mode = #tpu.pipeline_mode<synchronous>, transform_indices = @transform_2, window_bounds = array<i64: 4, 128, 128>}, {pipeline_mode = #tpu.pipeline_mode<synchronous>, transform_indices = @transform_3, window_bounds = array<i64: 256, 128>}, {pipeline_mode = #tpu.pipeline_mode<synchronous>, transform_indices = @transform_4, window_bounds = array<i64: 8, 128>}, {transform_indices = @transform_5, window_bounds = array<i64: 256, 128>}]} {
    %c0 = arith.constant 0 : index
    %c0_0 = arith.constant 0 : index
    %0 = vector.load %arg1[%c0, %c0_0] : memref<256x128xbf16, #tpu.memory_space<vmem>>, vector<256x128xbf16>
    %c0_1 = arith.constant 0 : index
    %c0_2 = arith.constant 0 : index
    %1 = vector.load %arg2[%c0_1, %c0_2] : memref<256x128xbf16, #tpu.memory_space<vmem>>, vector<256x128xbf16>
    %2 = tpu.concatenate %0, %1 in 0 : vector<256x128xbf16>, vector<256x128xbf16> -> vector<512x128xbf16>
    %c0_3 = arith.constant 0 : index
    %c0_4 = arith.constant 0 : index
    %c0_5 = arith.constant 0 : index
    %3 = vector.load %arg3[%c0_3, %c0_4, %c0_5] : memref<4x128x128xbf16, #tpu.memory_space<vmem>>, vector<1x128x128xbf16>
    %4 = vector.shape_cast %3 : vector<1x128x128xbf16> to vector<128x128xbf16>
    %cst = arith.constant dense<0.000000e+00> : vector<512x128xf32>
    %5 = tpu.matmul %2, %4, %cst {dimension_numbers = #tpu.dot_dimension_numbers<[1], [0], [0], [1], [0, 0, 1, 1], [], []>} : vector<512x128xbf16>, vector<128x128xbf16>, vector<512x128xf32> -> vector<512x128xf32>
    %6 = arith.truncf %5 : vector<512x128xf32> to vector<512x128xbf16>
    %c0_6 = arith.constant 0 : index
    %c0_7 = arith.constant 0 : index
    %7 = vector.load %arg5[%c0_6, %c0_7] : memref<8x128xf32, #tpu.memory_space<vmem>>, vector<1x128xf32>
    %8 = arith.truncf %7 : vector<1x128xf32> to vector<1x128xbf16>
    %9 = vector.broadcast %8 : vector<1x128xbf16> to vector<512x128xbf16>
    %10 = arith.addf %6, %9 : vector<512x128xbf16>
    %cst_8 = arith.constant 0.000000e+00 : bf16
    %11 = vector.broadcast %cst_8 : bf16 to vector<512x128xbf16>
    %12 = arith.maximumf %10, %11 : vector<512x128xbf16>
    %c1 = arith.constant 1 : index
    %c0_9 = arith.constant 0 : index
    %c0_10 = arith.constant 0 : index
    %13 = vector.load %arg3[%c1, %c0_9, %c0_10] : memref<4x128x128xbf16, #tpu.memory_space<vmem>>, vector<1x128x128xbf16>
    %14 = vector.shape_cast %13 : vector<1x128x128xbf16> to vector<128x128xbf16>
    %cst_11 = arith.constant dense<0.000000e+00> : vector<512x128xf32>
    %15 = tpu.matmul %12, %14, %cst_11 {dimension_numbers = #tpu.dot_dimension_numbers<[1], [0], [0], [1], [0, 0, 1, 1], [], []>} : vector<512x128xbf16>, vector<128x128xbf16>, vector<512x128xf32> -> vector<512x128xf32>
    %16 = arith.truncf %15 : vector<512x128xf32> to vector<512x128xbf16>
    %c1_12 = arith.constant 1 : index
    %c0_13 = arith.constant 0 : index
    %17 = vector.load %arg5[%c1_12, %c0_13] : memref<8x128xf32, #tpu.memory_space<vmem>>, vector<1x128xf32>
    %18 = arith.truncf %17 : vector<1x128xf32> to vector<1x128xbf16>
    %19 = vector.broadcast %18 : vector<1x128xbf16> to vector<512x128xbf16>
    %20 = arith.addf %16, %19 : vector<512x128xbf16>
    %cst_14 = arith.constant 0.000000e+00 : bf16
    %21 = vector.broadcast %cst_14 : bf16 to vector<512x128xbf16>
    %22 = arith.maximumf %20, %21 : vector<512x128xbf16>
    %23 = vector.extract_strided_slice %22 {offsets = [0, 0], sizes = [256, 128], strides = [1, 1]} : vector<512x128xbf16> to vector<256x128xbf16>
    %24 = vector.extract_strided_slice %22 {offsets = [256, 0], sizes = [256, 128], strides = [1, 1]} : vector<512x128xbf16> to vector<256x128xbf16>
    %25 = tpu.concatenate %23, %24 in 1 : vector<256x128xbf16>, vector<256x128xbf16> -> vector<256x256xbf16>
    %c0_15 = arith.constant 0 : index
    %c0_16 = arith.constant 0 : index
    %26 = vector.load %arg4[%c0_15, %c0_16] : memref<256x128xbf16, #tpu.memory_space<vmem>>, vector<256x128xbf16>
    %cst_17 = arith.constant dense<0.000000e+00> : vector<256x128xf32>
    %27 = tpu.matmul %25, %26, %cst_17 {dimension_numbers = #tpu.dot_dimension_numbers<[1], [0], [0], [1], [0, 0, 1, 1], [], []>} : vector<256x256xbf16>, vector<256x128xbf16>, vector<256x128xf32> -> vector<256x128xf32>
    %28 = arith.truncf %27 : vector<256x128xf32> to vector<256x128xbf16>
    %c2 = arith.constant 2 : index
    %c0_18 = arith.constant 0 : index
    %29 = vector.load %arg5[%c2, %c0_18] : memref<8x128xf32, #tpu.memory_space<vmem>>, vector<1x128xf32>
    %30 = arith.truncf %29 : vector<1x128xf32> to vector<1x128xbf16>
    %31 = vector.broadcast %30 : vector<1x128xbf16> to vector<256x128xbf16>
    %32 = arith.addf %28, %31 : vector<256x128xbf16>
    %cst_19 = arith.constant 0.000000e+00 : bf16
    %33 = vector.broadcast %cst_19 : bf16 to vector<256x128xbf16>
    %34 = arith.maximumf %32, %33 : vector<256x128xbf16>
    %c2_20 = arith.constant 2 : index
    %c0_21 = arith.constant 0 : index
    %c0_22 = arith.constant 0 : index
    %35 = vector.load %arg3[%c2_20, %c0_21, %c0_22] : memref<4x128x128xbf16, #tpu.memory_space<vmem>>, vector<1x128x128xbf16>
    %36 = vector.shape_cast %35 : vector<1x128x128xbf16> to vector<128x128xbf16>
    %cst_23 = arith.constant dense<0.000000e+00> : vector<256x128xf32>
    %37 = tpu.matmul %34, %36, %cst_23 {dimension_numbers = #tpu.dot_dimension_numbers<[1], [0], [0], [1], [0, 0, 1, 1], [], []>} : vector<256x128xbf16>, vector<128x128xbf16>, vector<256x128xf32> -> vector<256x128xf32>
    %38 = arith.truncf %37 : vector<256x128xf32> to vector<256x128xbf16>
    %c3 = arith.constant 3 : index
    %c0_24 = arith.constant 0 : index
    %39 = vector.load %arg5[%c3, %c0_24] : memref<8x128xf32, #tpu.memory_space<vmem>>, vector<1x128xf32>
    %40 = arith.truncf %39 : vector<1x128xf32> to vector<1x128xbf16>
    %41 = vector.broadcast %40 : vector<1x128xbf16> to vector<256x128xbf16>
    %42 = arith.addf %38, %41 : vector<256x128xbf16>
    %cst_25 = arith.constant 0.000000e+00 : bf16
    %43 = vector.broadcast %cst_25 : bf16 to vector<256x128xbf16>
    %44 = arith.maximumf %42, %43 : vector<256x128xbf16>
    %c3_26 = arith.constant 3 : index
    %c0_27 = arith.constant 0 : index
    %c0_28 = arith.constant 0 : index
    %45 = vector.load %arg3[%c3_26, %c0_27, %c0_28] : memref<4x128x128xbf16, #tpu.memory_space<vmem>>, vector<1x128x128xbf16>
    %46 = vector.shape_cast %45 : vector<1x128x128xbf16> to vector<128x128xbf16>
    %cst_29 = arith.constant dense<0.000000e+00> : vector<256x128xf32>
    %47 = tpu.matmul %44, %46, %cst_29 {dimension_numbers = #tpu.dot_dimension_numbers<[1], [0], [0], [1], [0, 0, 1, 1], [], []>} : vector<256x128xbf16>, vector<128x128xbf16>, vector<256x128xf32> -> vector<256x128xf32>
    %c4 = arith.constant 4 : index
    %c0_30 = arith.constant 0 : index
    %48 = vector.load %arg5[%c4, %c0_30] : memref<8x128xf32, #tpu.memory_space<vmem>>, vector<1x128xf32>
    %49 = vector.broadcast %48 : vector<1x128xf32> to vector<256x128xf32>
    %50 = arith.addf %47, %49 : vector<256x128xf32>
    %c0_31 = arith.constant 0 : index
    %c0_32 = arith.constant 0 : index
    %51 = vector.load %arg6[%c0_31, %c0_32] : memref<256x128xf32, #tpu.memory_space<vmem>>, vector<256x128xf32>
    tpu.vector_store %arg6[%c0_31, %c0_32], %50 {strides = array<i32>} : memref<256x128xf32, #tpu.memory_space<vmem>>, vector<256x128xf32>,
    return
  }
  func.func @transform_0(%arg0: i32) -> (i32, i32) {
    %c0_i32 = arith.constant 0 : i32
    %c0_i32_0 = arith.constant 0 : i32
    return %arg0, %c0_i32 : i32, i32
  }
  func.func @transform_1(%arg0: i32) -> (i32, i32) {
    %c0_i32 = arith.constant 0 : i32
    %c0_i32_0 = arith.constant 0 : i32
    return %arg0, %c0_i32 : i32, i32
  }
  func.func @transform_2(%arg0: i32) -> (i32, i32, i32) {
    %c0_i32 = arith.constant 0 : i32
    %c0_i32_0 = arith.constant 0 : i32
    %c0_i32_1 = arith.constant 0 : i32
    %c0_i32_2 = arith.constant 0 : i32
    return %c0_i32, %c0_i32_0, %c0_i32_1 : i32, i32, i32
  }
  func.func @transform_3(%arg0: i32) -> (i32, i32) {
    %c0_i32 = arith.constant 0 : i32
    %c0_i32_0 = arith.constant 0 : i32
    %c0_i32_1 = arith.constant 0 : i32
    return %c0_i32, %c0_i32_0 : i32, i32
  }
  func.func @transform_4(%arg0: i32) -> (i32, i32) {
    %c0_i32 = arith.constant 0 : i32
    %c0_i32_0 = arith.constant 0 : i32
    %c0_i32_1 = arith.constant 0 : i32
    return %c0_i32, %c0_i32_0 : i32, i32
  }
  func.func @transform_5(%arg0: i32) -> (i32, i32) {
    %c0_i32 = arith.constant 0 : i32
    %c0_i32_0 = arith.constant 0 : i32
    return %arg0, %c0_i32 : i32, i32
  }
}

</mosaic_0001>

<llo_original>
// kernel: deepchess_forward.1
$region0: #{deepchess_forward.1}
  #allocation0 [shape = 'u32[]', space=smem, size = 0x4, offset = 0x4, fixed_abs, tag = 'smem constant byte address 0x4 - core index']
  #allocation1 [shape = 'u32[144,128]{1,0:T(1,128)}', space=vmem, size = 0x12000, scoped, tag = 'internal scratch']
  %s0 = inlined_call_operand.hbm [shape: bf16[1024,128], index: 0, kind: input, shape index: {}]
  %s1 = inlined_call_operand.hbm [shape: bf16[1024,128], index: 1, kind: input, shape index: {}]
  %s2 = inlined_call_operand.hbm [shape: bf16[4,128,128], index: 2, kind: input, shape index: {}]
  %s3 = inlined_call_operand.hbm [shape: bf16[256,128], index: 3, kind: input, shape index: {}]
  %s4 = inlined_call_operand.vmem [shape: f32[8,128], index: 4, kind: input, shape index: {}]
  %s5 = inlined_call_operand.hbm [shape: f32[1024,128], index: 5, kind: output, shape index: {}]
  %s6 = sld [smem:[#allocation0]]
  $region69: #{deepchess_forward.1} parent=0
    _
  %s8 = ssub.s32 1, %s6
  %s9 = scalar_select 0, %s8, %s6
  $region1: #{deepchess_forward.1} parent=0
    #allocation2 [shape = 'u8[131072]{0}', space=vmem, size = 0x20000, scoped, tag = 'input window, operand 0']
    #allocation3 [shape = 's32[2]{0}', space=sflag, size = 0x8, scoped, tag = 'scoped memory for deepchess_forward.1']
    #allocation4 [shape = 's32[2]{0}', space=sflag, size = 0x8, scoped, tag = 'scoped memory for deepchess_forward.1']
    #allocation5 [shape = 'u8[131072]{0}', space=vmem, size = 0x20000, scoped, tag = 'input window, operand 1']
    #allocation6 [shape = 's32[2]{0}', space=sflag, size = 0x8, scoped, tag = 'scoped memory for deepchess_forward.1']
    #allocation7 [shape = 'u8[131072]{0}', space=vmem, size = 0x20000, scoped, tag = 'input window, operand 2, single buffered']
    #allocation8 [shape = 'u8[65536]{0}', space=vmem, size = 0x10000, scoped, tag = 'input window, operand 3, single buffered']
    #allocation9 [shape = 's32[1]{0}', space=sflag, size = 0x4, scoped, tag = 'scoped memory for deepchess_forward.1']
    #allocation10 [shape = 'u8[262144]{0}', space=vmem, size = 0x40000, scoped, tag = 'output window, operand 0']
    %10 = vsyncpa [#allocation3], 0
    %s11 = scalar_lea.sflag [#allocation3], 1
    %12 = vsyncpa %s11, 0
    %13 = vsyncpa [#allocation6], 0
    %s14 = scalar_lea.sflag [#allocation6], 1
    %15 = vsyncpa %s14, 0
    %16 = vsyncpa [#allocation9], 0
    %17 = vsyncpa [#allocation4], 0
    %s18 = scalar_lea.sflag [#allocation4], 1
    %19 = vsyncpa %s18, 0
    loop: start=0, step=1, limit=6
    $region2: #{deepchess_forward.1} parent=1 // loop_pre_header
      _
    $region3: #{deepchess_forward.1} parent=1 // loop_header
      %s21 = sphi 0, %s25
      %p22 = scmp.ge.s32.totalorder %s21, 6
      %s31 = sphi 0, %s33
      %s34 = sphi 0, %s31
      %s35 = sphi 0, %s34
      %s51 = sphi 0, %s35
      %s57 = sphi 0, %s59
      %s60 = sphi 0, %s57
      %s61 = sphi 0, %s60
      %s77 = sphi 0, %s61
      %s81 = sphi 0, %s81
      %s83 = sphi 0, %s81
      %s84 = sphi 0, %s83
      %s98 = sphi 0, %s84
      %s102 = sphi 0, %s102
      %s104 = sphi 0, %s102
      %s105 = sphi 0, %s104
      %s119 = sphi 0, %s105
      %s123 = sphi 0, %s123
      %s125 = sphi 0, %s123
      %s126 = sphi 0, %s125
      %s140 = sphi 0, %s126
      %s146 = sphi 0, %s148
      %s149 = sphi 0, %s146
      %s150 = sphi 0, %s149
      %s166 = sphi 0, %s150
    $region4: #{deepchess_forward.1} parent=1 // loop_header_branch
      %24 = sbr.rel (%p22) target = $region8
    $region5: #{deepchess_forward.1} parent=1 // loop_body
      %s26 = ssub.s32 %s21, 1
      %s27 = ssub.s32 %s21, 2
      %s28 = sadd.s32 %s21, 1
      %s29 = ssub.s32 %s21, %s28
      %p30 = scmp.eq.s32.totalorder %s29, 0
      %s32 = sadd.s32 %s31, 1
      %s33 = scalar_select %p30, %s31, %s32
      %p36 = pneg %p30
      %p37 = scmp.eq.s32.totalorder %s21, 3
      %p38 = por %p36, %p37
      %p39 = scmp.ne.s32.totalorder %s31, %s34
      %p40 = scmp.eq.s32.totalorder %s21, 0
      %p41 = por %p39, %p40
      %p42 = scmp.ne.s32.totalorder %s31, %s34
      %p43 = scmp.eq.s32.totalorder %s26, 3
      %p44 = por %p42, %p43
      %p45 = scmp.ne.s32.totalorder %s34, %s35
      %p46 = scmp.eq.s32.totalorder %s26, 0
      %p47 = por %p45, %p46
      %p48 = scmp.ne.s32.totalorder %s34, %s35
      %p49 = scmp.eq.s32.totalorder %s27, 3
      %p50 = por %p48, %p49
      %p52 = scmp.ne.s32.totalorder %s35, %s51
      %p53 = scmp.eq.s32.totalorder %s27, 0
      %p54 = por %p52, %p53
      %s55 = ssub.s32 %s21, %s28
      %p56 = scmp.eq.s32.totalorder %s55, 0
      %s58 = sadd.s32 %s57, 1
      %s59 = scalar_select %p56, %s57, %s58
      %p62 = pneg %p56
      %p63 = scmp.eq.s32.totalorder %s21, 3
      %p64 = por %p62, %p63
      %p65 = scmp.ne.s32.totalorder %s57, %s60
      %p66 = scmp.eq.s32.totalorder %s21, 0
      %p67 = por %p65, %p66
      %p68 = scmp.ne.s32.totalorder %s57, %s60
      %p69 = scmp.eq.s32.totalorder %s26, 3
      %p70 = por %p68, %p69
      %p71 = scmp.ne.s32.totalorder %s60, %s61
      %p72 = scmp.eq.s32.totalorder %s26, 0
      %p73 = por %p71, %p72
      %p74 = scmp.ne.s32.totalorder %s60, %s61
      %p75 = scmp.eq.s32.totalorder %s27, 3
      %p76 = por %p74, %p75
      %p78 = scmp.ne.s32.totalorder %s61, %s77
      %p79 = scmp.eq.s32.totalorder %s27, 0
      %p80 = por %p78, %p79
      %s82 = sadd.s32 %s81, 1
      %p85 = scmp.eq.s32.totalorder %s21, 3
      %p86 = scmp.ne.s32.totalorder %s81, %s83
      %p87 = scmp.eq.s32.totalorder %s21, 0
      %p88 = por %p86, %p87
      %p89 = scmp.ne.s32.totalorder %s81, %s83
      %p90 = scmp.eq.s32.totalorder %s26, 3
      %p91 = por %p89, %p90
      %p92 = scmp.ne.s32.totalorder %s83, %s84
      %p93 = scmp.eq.s32.totalorder %s26, 0
      %p94 = por %p92, %p93
      %p95 = scmp.ne.s32.totalorder %s83, %s84
      %p96 = scmp.eq.s32.totalorder %s27, 3
      %p97 = por %p95, %p96
      %p99 = scmp.ne.s32.totalorder %s84, %s98
      %p100 = scmp.eq.s32.totalorder %s27, 0
      %p101 = por %p99, %p100
      %s103 = sadd.s32 %s102, 1
      %p106 = scmp.eq.s32.totalorder %s21, 3
      %p107 = scmp.ne.s32.totalorder %s102, %s104
      %p108 = scmp.eq.s32.totalorder %s21, 0
      %p109 = por %p107, %p108
      %p110 = scmp.ne.s32.totalorder %s102, %s104
      %p111 = scmp.eq.s32.totalorder %s26, 3
      %p112 = por %p110, %p111
      %p113 = scmp.ne.s32.totalorder %s104, %s105
      %p114 = scmp.eq.s32.totalorder %s26, 0
      %p115 = por %p113, %p114
      %p116 = scmp.ne.s32.totalorder %s104, %s105
      %p117 = scmp.eq.s32.totalorder %s27, 3
      %p118 = por %p116, %p117
      %p120 = scmp.ne.s32.totalorder %s105, %s119
      %p121 = scmp.eq.s32.totalorder %s27, 0
      %p122 = por %p120, %p121
      %s124 = sadd.s32 %s123, 1
      %p127 = scmp.eq.s32.totalorder %s21, 3
      %p128 = scmp.ne.s32.totalorder %s123, %s125
      %p129 = scmp.eq.s32.totalorder %s21, 0
      %p130 = por %p128, %p129
      %p131 = scmp.ne.s32.totalorder %s123, %s125
      %p132 = scmp.eq.s32.totalorder %s26, 3
      %p133 = por %p131, %p132
      %p134 = scmp.ne.s32.totalorder %s125, %s126
      %p135 = scmp.eq.s32.totalorder %s26, 0
      %p136 = por %p134, %p135
      %p137 = scmp.ne.s32.totalorder %s125, %s126
      %p138 = scmp.eq.s32.totalorder %s27, 3
      %p139 = por %p137, %p138
      %p141 = scmp.ne.s32.totalorder %s126, %s140
      %p142 = scmp.eq.s32.totalorder %s27, 0
      %p143 = por %p141, %p142
      %s144 = ssub.s32 %s21, %s28
      %p145 = scmp.eq.s32.totalorder %s144, 0
      %s147 = sadd.s32 %s146, 1
      %s148 = scalar_select %p145, %s146, %s147
      %p151 = pneg %p145
      %p152 = scmp.eq.s32.totalorder %s21, 3
      %p153 = por %p151, %p152
      %p154 = scmp.ne.s32.totalorder %s146, %s149
      %p155 = scmp.eq.s32.totalorder %s21, 0
      %p156 = por %p154, %p155
      %p157 = scmp.ne.s32.totalorder %s146, %s149
      %p158 = scmp.eq.s32.totalorder %s26, 3
      %p159 = por %p157, %p158
      %p160 = scmp.ne.s32.totalorder %s149, %s150
      %p161 = scmp.eq.s32.totalorder %s26, 0
      %p162 = por %p160, %p161
      %p163 = scmp.ne.s32.totalorder %s149, %s150
      %p164 = scmp.eq.s32.totalorder %s27, 3
      %p165 = por %p163, %p164
      %p167 = scmp.ne.s32.totalorder %s150, %s166
      %p168 = scmp.eq.s32.totalorder %s27, 0
      %p169 = por %p167, %p168
      %p170 = scmp.le.s32.totalorder 1, %s21
      %p171 = scmp.lt.s32.totalorder %s21, 5
      %p172 = pnand %p170, %p171
      %p173 = pneg %p172
      // Predicated region
      $region9: #{deepchess_forward.1} parent=5 // pred_check
        _
      $region10: #{deepchess_forward.1} parent=5 // pred_check_branch
        %175 = sbr.rel (%p172) target = $region12
      $region11: #{deepchess_forward.1} parent=5 // pred_region
        %s176 = ssub.s32 %s21, 1
        // Predicated region
        $region13: #{deepchess_forward.1} parent=11 // pred_check
          %p177 = pneg %p94
        $region14: #{deepchess_forward.1} parent=11 // pred_check_branch
          %179 = sbr.rel (%p177) target = $region16
        $region15: #{deepchess_forward.1} parent=11 // pred_region
          %s181 = ssub.s32 4096, 4096
          %182 = vsyncadd [#allocation6], %s181
          %s183 = sshll.u32 [#allocation7], 4
          %s184 = int_to_ptr.vmem [resolvable:$true] %s183
          %189 = dma.hbm_to_vmem [thread:$0]  %s2, 4096, %s184, [#allocation6], 64, 64, 4
        $region16: #{deepchess_forward.1} parent=11 // pred_fallthru
          _
        // Predicated region
        $region17: #{deepchess_forward.1} parent=11 // pred_check
          %p190 = pneg %p115
        $region18: #{deepchess_forward.1} parent=11 // pred_check_branch
          %192 = sbr.rel (%p190) target = $region20
        $region19: #{deepchess_forward.1} parent=11 // pred_region
          %s194 = ssub.s32 2048, 2048
          %195 = vsyncadd [#allocation9], %s194
          %s196 = sshll.u32 [#allocation8], 4
          %s197 = int_to_ptr.vmem [resolvable:$true] %s196
          %202 = dma.hbm_to_vmem [thread:$0]  %s3, 2048, %s197, [#allocation9], 64, 64, 4
        $region20: #{deepchess_forward.1} parent=11 // pred_fallthru
          _
        // Predicated region
        $region21: #{deepchess_forward.1} parent=11 // pred_check
          %p203 = pneg %p136
        $region22: #{deepchess_forward.1} parent=11 // pred_check_branch
          %205 = sbr.rel (%p203) target = $region24
        $region23: #{deepchess_forward.1} parent=11 // pred_region
          _
        $region24: #{deepchess_forward.1} parent=11 // pred_fallthru
          _
      $region12: #{deepchess_forward.1} parent=5 // pred_fallthru
        _
      %p206 = scmp.lt.s32.totalorder %s21, 4
      // Predicated region
      $region25: #{deepchess_forward.1} parent=5 // pred_check
        %p207 = pneg %p206
      $region26: #{deepchess_forward.1} parent=5 // pred_check_branch
        %209 = sbr.rel (%p207) target = $region28
      $region27: #{deepchess_forward.1} parent=5 // pred_region
        // Predicated region
        $region29: #{deepchess_forward.1} parent=27 // pred_check
          %p210 = pneg %p41
        $region30: #{deepchess_forward.1} parent=27 // pred_check_branch
          %212 = sbr.rel (%p210) target = $region32
        $region31: #{deepchess_forward.1} parent=27 // pred_region
          %s213 = sand.u32 %s31, 1
          %s214 = scalar_lea.sflag [#allocation3], %s213
          %s215 = sand.u32 %s31, 1
          %s216 = smul.addr %s215, 128
          %s217 = scalar_lea.vmem [#allocation2], %s216
          %s218 = smul.u32 32, %s21
          %s220 = ssub.s32 2048, 2048
          %221 = vsyncadd %s214, %s220
          %s222 = smul.addr %s218, 64
          %s223 = scalar_lea.hbm %s0, %s222
          %s224 = sshll.u32 %s217, 4
          %s225 = int_to_ptr.vmem [resolvable:$true] %s224
          %230 = dma.hbm_to_vmem [thread:$0]  %s223, 2048, %s225, %s214, 64, 64, 4
        $region32: #{deepchess_forward.1} parent=27 // pred_fallthru
          _
        // Predicated region
        $region33: #{deepchess_forward.1} parent=27 // pred_check
          %p231 = pneg %p67
        $region34: #{deepchess_forward.1} parent=27 // pred_check_branch
          %233 = sbr.rel (%p231) target = $region36
        $region35: #{deepchess_forward.1} parent=27 // pred_region
          %s234 = sand.u32 %s21, 1
          %s235 = scalar_lea.sflag [#allocation6], %s234
          %s236 = sand.u32 %s57, 1
          %s237 = smul.addr %s236, 128
          %s238 = scalar_lea.vmem [#allocation5], %s237
          %s239 = smul.u32 32, %s21
          %s241 = ssub.s32 2048, 2048
          %242 = vsyncadd %s235, %s241
          %s243 = smul.addr %s239, 64
          %s244 = scalar_lea.hbm %s1, %s243
          %s245 = sshll.u32 %s238, 4
          %s246 = int_to_ptr.vmem [resolvable:$true] %s245
          %251 = dma.hbm_to_vmem [thread:$0]  %s244, 2048, %s246, %s235, 64, 64, 4
        $region36: #{deepchess_forward.1} parent=27 // pred_fallthru
          _
      $region28: #{deepchess_forward.1} parent=5 // pred_fallthru
        _
      %p252 = scmp.le.s32.totalorder 1, %s21
      %p253 = scmp.lt.s32.totalorder %s21, 5
      %p254 = pnand %p252, %p253
      %p255 = pneg %p254
      // Predicated region
      $region37: #{deepchess_forward.1} parent=5 // pred_check
        _
      $region38: #{deepchess_forward.1} parent=5 // pred_check_branch
        %257 = sbr.rel (%p254) target = $region40
      $region39: #{deepchess_forward.1} parent=5 // pred_region
        %s258 = ssub.s32 %s21, 1
        %s259 = sand.u32 %s34, 1
        %s260 = scalar_lea.sflag [#allocation3], %s259
        %s261 = sand.u32 %s34, 1
        %s262 = smul.addr %s261, 128
        %s263 = scalar_lea.vmem [#allocation2], %s262
        // Predicated region
        $region41: #{deepchess_forward.1} parent=39 // pred_check
          %p264 = pneg %p47
        $region42: #{deepchess_forward.1} parent=39 // pred_check_branch
          %266 = sbr.rel (%p264) target = $region44
        $region43: #{deepchess_forward.1} parent=39 // pred_region
          %267 = dma.done %s260, 2048
        $region44: #{deepchess_forward.1} parent=39 // pred_fallthru
          _
        %s268 = sand.u32 %s26, 1
        %s269 = scalar_lea.sflag [#allocation6], %s268
        %s270 = sand.u32 %s60, 1
        %s271 = smul.addr %s270, 128
        %s272 = scalar_lea.vmem [#allocation5], %s271
        // Predicated region
        $region45: #{deepchess_forward.1} parent=39 // pred_check
          %p273 = pneg %p73
        $region46: #{deepchess_forward.1} parent=39 // pred_check_branch
          %275 = sbr.rel (%p273) target = $region48
        $region47: #{deepchess_forward.1} parent=39 // pred_region
          %276 = dma.done %s269, 2048
        $region48: #{deepchess_forward.1} parent=39 // pred_fallthru
          _
        // Predicated region
        $region49: #{deepchess_forward.1} parent=39 // pred_check
          %p277 = pneg %p94
        $region50: #{deepchess_forward.1} parent=39 // pred_check_branch
          %279 = sbr.rel (%p277) target = $region52
        $region51: #{deepchess_forward.1} parent=39 // pred_region
          %280 = dma.done [#allocation6], 4096
        $region52: #{deepchess_forward.1} parent=39 // pred_fallthru
          _
        // Predicated region
        $region53: #{deepchess_forward.1} parent=39 // pred_check
          %p281 = pneg %p115
        $region54: #{deepchess_forward.1} parent=39 // pred_check_branch
          %283 = sbr.rel (%p281) target = $region56
        $region55: #{deepchess_forward.1} parent=39 // pred_region
          %284 = dma.done [#allocation9], 2048
        $region56: #{deepchess_forward.1} parent=39 // pred_fallthru
          _
        %s285 = sand.u32 %s34, 1
        %s286 = scalar_lea.sflag [#allocation3], %s285
        %s287 = sand.u32 %s34, 1
        %s288 = smul.addr %s287, 128
        %s289 = scalar_lea.vmem [#allocation2], %s288
        %p290 = pneg %p47
        %p291 = pneg %p44
        %s292 = sand.u32 %s26, 1
        %s293 = scalar_lea.sflag [#allocation6], %s292
        %s294 = sand.u32 %s60, 1
        %s295 = smul.addr %s294, 128
        %s296 = scalar_lea.vmem [#allocation5], %s295
        %p297 = pneg %p73
        %p298 = pneg %p70
        %p299 = pneg %p94
        %p300 = pneg %p91
        %p301 = pneg %p115
        %p302 = pneg %p112
        %p303 = pneg %p136
        %p304 = pneg %p133
        %p305 = pneg %p162
        %p306 = pneg %p159
        %s307 = sand.u32 %s149, 1
        %s308 = scalar_lea.sflag [#allocation4], %s307
        %s309 = sand.u32 %s149, 1
        %s310 = smul.addr %s309, 256
        %s311 = scalar_lea.vmem [#allocation10], %s310
        %s312 = smul.u32 32, %s26
        %s313 = smul.u32 32, %s26
        %s314 = smul.u32 32, %s26
        %v316 = vld [vmem:[%s263] sm:$0xf]
        %v317 = vld [vmem:[%s263 + $0x4] sm:$0xf]
        %v318 = vld [vmem:[%s263 + $0x8] sm:$0xf]
        %v319 = vld [vmem:[%s263 + $0xc] sm:$0xf]
        %v320 = vld [vmem:[%s263 + $0x10] sm:$0xf]
        %v321 = vld [vmem:[%s263 + $0x14] sm:$0xf]
        %v322 = vld [vmem:[%s263 + $0x18] sm:$0xf]
        %v323 = vld [vmem:[%s263 + $0x1c] sm:$0xf]
        %v324 = vld [vmem:[%s263 + $0x20] sm:$0xf]
        %v325 = vld [vmem:[%s263 + $0x24] sm:$0xf]
        %v326 = vld [vmem:[%s263 + $0x28] sm:$0xf]
        %v327 = vld [vmem:[%s263 + $0x2c] sm:$0xf]
        %v328 = vld [vmem:[%s263 + $0x30] sm:$0xf]
        %v329 = vld [vmem:[%s263 + $0x34] sm:$0xf]
        %v330 = vld [vmem:[%s263 + $0x38] sm:$0xf]
        %v331 = vld [vmem:[%s263 + $0x3c] sm:$0xf]
        %v332 = vld [vmem:[%s263 + $0x40] sm:$0xf]
        %v333 = vld [vmem:[%s263 + $0x44] sm:$0xf]
        %v334 = vld [vmem:[%s263 + $0x48] sm:$0xf]
        %v335 = vld [vmem:[%s263 + $0x4c] sm:$0xf]
        %v336 = vld [vmem:[%s263 + $0x50] sm:$0xf]
        %v337 = vld [vmem:[%s263 + $0x54] sm:$0xf]
        %v338 = vld [vmem:[%s263 + $0x58] sm:$0xf]
        %v339 = vld [vmem:[%s263 + $0x5c] sm:$0xf]
        %v340 = vld [vmem:[%s263 + $0x60] sm:$0xf]
        %v341 = vld [vmem:[%s263 + $0x64] sm:$0xf]
        %v342 = vld [vmem:[%s263 + $0x68] sm:$0xf]
        %v343 = vld [vmem:[%s263 + $0x6c] sm:$0xf]
        %v344 = vld [vmem:[%s263 + $0x70] sm:$0xf]
        %v345 = vld [vmem:[%s263 + $0x74] sm:$0xf]
        %v346 = vld [vmem:[%s263 + $0x78] sm:$0xf]
        %v347 = vld [vmem:[%s263 + $0x7c] sm:$0xf]
        %v348 = vld [vmem:[%s272] sm:$0xf]
        %v349 = vld [vmem:[%s272 + $0x4] sm:$0xf]
        %v350 = vld [vmem:[%s272 + $0x8] sm:$0xf]
        %v351 = vld [vmem:[%s272 + $0xc] sm:$0xf]
        %v352 = vld [vmem:[%s272 + $0x10] sm:$0xf]
        %v353 = vld [vmem:[%s272 + $0x14] sm:$0xf]
        %v354 = vld [vmem:[%s272 + $0x18] sm:$0xf]
        %v355 = vld [vmem:[%s272 + $0x1c] sm:$0xf]
        %v356 = vld [vmem:[%s272 + $0x20] sm:$0xf]
        %v357 = vld [vmem:[%s272 + $0x24] sm:$0xf]
        %v358 = vld [vmem:[%s272 + $0x28] sm:$0xf]
        %v359 = vld [vmem:[%s272 + $0x2c] sm:$0xf]
        %v360 = vld [vmem:[%s272 + $0x30] sm:$0xf]
        %v361 = vld [vmem:[%s272 + $0x34] sm:$0xf]
        %v362 = vld [vmem:[%s272 + $0x38] sm:$0xf]
        %v363 = vld [vmem:[%s272 + $0x3c] sm:$0xf]
        %v364 = vld [vmem:[%s272 + $0x40] sm:$0xf]
        %v365 = vld [vmem:[%s272 + $0x44] sm:$0xf]
        %v366 = vld [vmem:[%s272 + $0x48] sm:$0xf]
        %v367 = vld [vmem:[%s272 + $0x4c] sm:$0xf]
        %v368 = vld [vmem:[%s272 + $0x50] sm:$0xf]
        %v369 = vld [vmem:[%s272 + $0x54] sm:$0xf]
        %v370 = vld [vmem:[%s272 + $0x58] sm:$0xf]
        %v371 = vld [vmem:[%s272 + $0x5c] sm:$0xf]
        %v372 = vld [vmem:[%s272 + $0x60] sm:$0xf]
        %v373 = vld [vmem:[%s272 + $0x64] sm:$0xf]
        %v374 = vld [vmem:[%s272 + $0x68] sm:$0xf]
        %v375 = vld [vmem:[%s272 + $0x6c] sm:$0xf]
        %v376 = vld [vmem:[%s272 + $0x70] sm:$0xf]
        %v377 = vld [vmem:[%s272 + $0x74] sm:$0xf]
        %v378 = vld [vmem:[%s272 + $0x78] sm:$0xf]
        %v379 = vld [vmem:[%s272 + $0x7c] sm:$0xf]
        %v412 = vunpack.c.l.b16 %v316
        %v413 = vunpack.c.l.b16 %v317
        %v414 = vunpack.c.l.b16 %v318
        %v415 = vunpack.c.l.b16 %v319
        %v416 = vunpack.c.l.b16 %v320
        %v417 = vunpack.c.l.b16 %v321
        %v418 = vunpack.c.l.b16 %v322
        %v419 = vunpack.c.l.b16 %v323
        %v420 = vunpack.c.l.b16 %v324
        %v421 = vunpack.c.l.b16 %v325
        %v422 = vunpack.c.l.b16 %v326
        %v423 = vunpack.c.l.b16 %v327
        %v424 = vunpack.c.l.b16 %v328
        %v425 = vunpack.c.l.b16 %v329
        %v426 = vunpack.c.l.b16 %v330
        %v427 = vunpack.c.l.b16 %v331
        %v428 = vunpack.c.l.b16 %v332
        %v429 = vunpack.c.l.b16 %v333
        %v430 = vunpack.c.l.b16 %v334
        %v431 = vunpack.c.l.b16 %v335
        %v432 = vunpack.c.l.b16 %v336
        %v433 = vunpack.c.l.b16 %v337
        %v434 = vunpack.c.l.b16 %v338
        %v435 = vunpack.c.l.b16 %v339
        %v436 = vunpack.c.l.b16 %v340
        %v437 = vunpack.c.l.b16 %v341
        %v438 = vunpack.c.l.b16 %v342
        %v439 = vunpack.c.l.b16 %v343
        %v440 = vunpack.c.l.b16 %v344
        %v441 = vunpack.c.l.b16 %v345
        %v442 = vunpack.c.l.b16 %v346
        %v443 = vunpack.c.l.b16 %v347
        %v444 = vpack.c.b16 %v413, %v412
        %v445 = vpack.c.b16 %v415, %v414
        %v446 = vpack.c.b16 %v417, %v416
        %v447 = vpack.c.b16 %v419, %v418
        %v448 = vpack.c.b16 %v421, %v420
        %v449 = vpack.c.b16 %v423, %v422
        %v450 = vpack.c.b16 %v425, %v424
        %v451 = vpack.c.b16 %v427, %v426
        %v452 = vpack.c.b16 %v429, %v428
        %v453 = vpack.c.b16 %v431, %v430
        %v454 = vpack.c.b16 %v433, %v432
        %v455 = vpack.c.b16 %v435, %v434
        %v456 = vpack.c.b16 %v437, %v436
        %v457 = vpack.c.b16 %v439, %v438
        %v458 = vpack.c.b16 %v441, %v440
        %v459 = vpack.c.b16 %v443, %v442
        %v508 = vunpack.c.l.b16 %v348
        %v509 = vunpack.c.l.b16 %v349
        %v510 = vunpack.c.l.b16 %v350
        %v511 = vunpack.c.l.b16 %v351
        %v512 = vunpack.c.l.b16 %v352
        %v513 = vunpack.c.l.b16 %v353
        %v514 = vunpack.c.l.b16 %v354
        %v515 = vunpack.c.l.b16 %v355
        %v516 = vunpack.c.l.b16 %v356
        %v517 = vunpack.c.l.b16 %v357
        %v518 = vunpack.c.l.b16 %v358
        %v519 = vunpack.c.l.b16 %v359
        %v520 = vunpack.c.l.b16 %v360
        %v521 = vunpack.c.l.b16 %v361
        %v522 = vunpack.c.l.b16 %v362
        %v523 = vunpack.c.l.b16 %v363
        %v524 = vunpack.c.l.b16 %v364
        %v525 = vunpack.c.l.b16 %v365
        %v526 = vunpack.c.l.b16 %v366
        %v527 = vunpack.c.l.b16 %v367
        %v528 = vunpack.c.l.b16 %v368
        %v529 = vunpack.c.l.b16 %v369
        %v530 = vunpack.c.l.b16 %v370
        %v531 = vunpack.c.l.b16 %v371
        %v532 = vunpack.c.l.b16 %v372
        %v533 = vunpack.c.l.b16 %v373
        %v534 = vunpack.c.l.b16 %v374
        %v535 = vunpack.c.l.b16 %v375
        %v536 = vunpack.c.l.b16 %v376
        %v537 = vunpack.c.l.b16 %v377
        %v538 = vunpack.c.l.b16 %v378
        %v539 = vunpack.c.l.b16 %v379
        %v540 = vpack.c.b16 %v509, %v508
        %v541 = vpack.c.b16 %v511, %v510
        %v542 = vpack.c.b16 %v513, %v512
        %v543 = vpack.c.b16 %v515, %v514
        %v544 = vpack.c.b16 %v517, %v516
        %v545 = vpack.c.b16 %v519, %v518
        %v546 = vpack.c.b16 %v521, %v520
        %v547 = vpack.c.b16 %v523, %v522
        %v548 = vpack.c.b16 %v525, %v524
        %v549 = vpack.c.b16 %v527, %v526
        %v550 = vpack.c.b16 %v529, %v528
        %v551 = vpack.c.b16 %v531, %v530
        %v552 = vpack.c.b16 %v533, %v532
        %v553 = vpack.c.b16 %v535, %v534
        %v554 = vpack.c.b16 %v537, %v536
        %v555 = vpack.c.b16 %v539, %v538
        %v572 = vld [vmem:[#allocation7] sm:$0xf]
        %v573 = vld [vmem:[#allocation7 + $0x4] sm:$0xf]
        %v574 = vld [vmem:[#allocation7 + $0x8] sm:$0xf]
        %v575 = vld [vmem:[#allocation7 + $0xc] sm:$0xf]
        %v576 = vld [vmem:[#allocation7 + $0x10] sm:$0xf]
        %v577 = vld [vmem:[#allocation7 + $0x14] sm:$0xf]
        %v578 = vld [vmem:[#allocation7 + $0x18] sm:$0xf]
        %v579 = vld [vmem:[#allocation7 + $0x1c] sm:$0xf]
        %v580 = vld [vmem:[#allocation7 + $0x20] sm:$0xf]
        %v581 = vld [vmem:[#allocation7 + $0x24] sm:$0xf]
        %v582 = vld [vmem:[#allocation7 + $0x28] sm:$0xf]
        %v583 = vld [vmem:[#allocation7 + $0x2c] sm:$0xf]
        %v584 = vld [vmem:[#allocation7 + $0x30] sm:$0xf]
        %v585 = vld [vmem:[#allocation7 + $0x34] sm:$0xf]
        %v586 = vld [vmem:[#allocation7 + $0x38] sm:$0xf]
        %v587 = vld [vmem:[#allocation7 + $0x3c] sm:$0xf]
        %v604 = vunpack.c.l.b16 %v572
        %v605 = vunpack.c.l.b16 %v573
        %v606 = vunpack.c.l.b16 %v574
        %v607 = vunpack.c.l.b16 %v575
        %v608 = vunpack.c.l.b16 %v576
        %v609 = vunpack.c.l.b16 %v577
        %v610 = vunpack.c.l.b16 %v578
        %v611 = vunpack.c.l.b16 %v579
        %v612 = vunpack.c.l.b16 %v580
        %v613 = vunpack.c.l.b16 %v581
        %v614 = vunpack.c.l.b16 %v582
        %v615 = vunpack.c.l.b16 %v583
        %v616 = vunpack.c.l.b16 %v584
        %v617 = vunpack.c.l.b16 %v585
        %v618 = vunpack.c.l.b16 %v586
        %v619 = vunpack.c.l.b16 %v587
        %v620 = vpack.c.b16 %v605, %v604
        %v621 = vpack.c.b16 %v607, %v606
        %v622 = vpack.c.b16 %v609, %v608
        %v623 = vpack.c.b16 %v611, %v610
        %v624 = vpack.c.b16 %v613, %v612
        %v625 = vpack.c.b16 %v615, %v614
        %v626 = vpack.c.b16 %v617, %v616
        %v627 = vpack.c.b16 %v619, %v618
        %636 = vmatprep.subr.bf16.mxu0 0
        %637 = vmatpush1.bf16.msra.mxu0 %v620
        %638 = vmatprep.subr.bf16.mxu0 0
        %639 = vmatpush1.bf16.msra.mxu0 %v621
        %640 = vmatprep.subr.bf16.mxu0 0
        %641 = vmatpush1.bf16.msra.mxu0 %v622
        %642 = vmatprep.subr.bf16.mxu0 0
        %643 = vmatpush1.bf16.msra.mxu0 %v623
        %644 = vmatprep.subr.bf16.mxu0 0
        %645 = vmatpush1.bf16.msra.mxu0 %v624
        %646 = vmatprep.subr.bf16.mxu0 0
        %647 = vmatpush1.bf16.msra.mxu0 %v625
        %648 = vmatprep.subr.bf16.mxu0 0
        %649 = vmatpush1.bf16.msra.mxu0 %v626
        %650 = vmatprep.subr.bf16.mxu0 0
        %651 = vmatpush1.bf16.msra.mxu0 %v627
        %652 = vmatprep.subr.bf16.mxu0 0
        %653 = vmatpush1.bf16.msra.mxu0 0
        %654 = vmatprep.subr.bf16.mxu0 0
        %655 = vmatpush1.bf16.msra.mxu0 0
        %656 = vmatprep.subr.bf16.mxu0 0
        %657 = vmatpush1.bf16.msra.mxu0 0
        %658 = vmatprep.subr.bf16.mxu0 0
        %659 = vmatpush1.bf16.msra.mxu0 0
        %660 = vmatprep.subr.bf16.mxu0 0
        %661 = vmatpush1.bf16.msra.mxu0 0
        %662 = vmatprep.subr.bf16.mxu0 0
        %663 = vmatpush1.bf16.msra.mxu0 0
        %664 = vmatprep.subr.bf16.mxu0 0
        %665 = vmatpush1.bf16.msra.mxu0 0
        %666 = vmatprep.subr.bf16.mxu0 0
        %667 = vmatpush1.bf16.msra.mxu0 0
        %668 = vmatprep.mubr.bf16.mxu0 0
        %669 = vmatmul.mubr.bf16.gmra.mrb[0].mxu0 %v444
        %v670 = vpop.f32.mrb[0].mxu0
        %v671 = vadd.f32 0.0, %v670
        %v672 = vpop.f32.mrb[0].mxu0
        %v673 = vpop.f32.mrb[0].mxu0
        %v674 = vadd.f32 0.0, %v673
        %v675 = vpop.f32.mrb[0].mxu0
        %676 = vmatprep.mubr.bf16.mxu0 0
        %677 = vmatmul.mubr.bf16.gmra.mrb[0].mxu0 %v445
        %v678 = vpop.f32.mrb[0].mxu0
        %v679 = vadd.f32 0.0, %v678
        %v680 = vpop.f32.mrb[0].mxu0
        %v681 = vpop.f32.mrb[0].mxu0
        %v682 = vadd.f32 0.0, %v681
        %v683 = vpop.f32.mrb[0].mxu0
        %684 = vmatprep.mubr.bf16.mxu0 0
        %685 = vmatmul.mubr.bf16.gmra.mrb[0].mxu0 %v446
        %v686 = vpop.f32.mrb[0].mxu0
        %v687 = vadd.f32 0.0, %v686
        %v688 = vpop.f32.mrb[0].mxu0
        %v689 = vpop.f32.mrb[0].mxu0
        %v690 = vadd.f32 0.0, %v689
        %v691 = vpop.f32.mrb[0].mxu0
        %692 = vmatprep.mubr.bf16.mxu0 0
        %693 = vmatmul.mubr.bf16.gmra.mrb[0].mxu0 %v447
        %v694 = vpop.f32.mrb[0].mxu0
        %v695 = vadd.f32 0.0, %v694
        %v696 = vpop.f32.mrb[0].mxu0
        %v697 = vpop.f32.mrb[0].mxu0
        %v698 = vadd.f32 0.0, %v697
        %v699 = vpop.f32.mrb[0].mxu0
        %700 = vmatprep.mubr.bf16.mxu0 0
        %701 = vmatmul.mubr.bf16.gmra.mrb[0].mxu0 %v448
        %v702 = vpop.f32.mrb[0].mxu0
        %v703 = vadd.f32 0.0, %v702
        %v704 = vpop.f32.mrb[0].mxu0
        %v705 = vpop.f32.mrb[0].mxu0
        %v706 = vadd.f32 0.0, %v705
        %v707 = vpop.f32.mrb[0].mxu0
        %708 = vmatprep.mubr.bf16.mxu0 0
        %709 = vmatmul.mubr.bf16.gmra.mrb[0].mxu0 %v449
        %v710 = vpop.f32.mrb[0].mxu0
        %v711 = vadd.f32 0.0, %v710
        %v712 = vpop.f32.mrb[0].mxu0
        %v713 = vpop.f32.mrb[0].mxu0
        %v714 = vadd.f32 0.0, %v713
        %v715 = vpop.f32.mrb[0].mxu0
        %716 = vmatprep.mubr.bf16.mxu0 0
        %717 = vmatmul.mubr.bf16.gmra.mrb[0].mxu0 %v450
        %v718 = vpop.f32.mrb[0].mxu0
        %v719 = vadd.f32 0.0, %v718
        %v720 = vpop.f32.mrb[0].mxu0
        %v721 = vpop.f32.mrb[0].mxu0
        %v722 = vadd.f32 0.0, %v721
        %v723 = vpop.f32.mrb[0].mxu0
        %724 = vmatprep.mubr.bf16.mxu0 0
        %725 = vmatmul.mubr.bf16.gmra.mrb[0].mxu0 %v451
        %v726 = vpop.f32.mrb[0].mxu0
        %v727 = vadd.f32 0.0, %v726
        %v728 = vpop.f32.mrb[0].mxu0
        %v729 = vpop.f32.mrb[0].mxu0
        %v730 = vadd.f32 0.0, %v729
        %v731 = vpop.f32.mrb[0].mxu0
        %732 = vmatprep.mubr.bf16.mxu0 0
        %733 = vmatmul.mubr.bf16.gmra.mrb[0].mxu0 %v452
        %v734 = vpop.f32.mrb[0].mxu0
        %v735 = vadd.f32 0.0, %v734
        %v736 = vpop.f32.mrb[0].mxu0
        %v737 = vpop.f32.mrb[0].mxu0
        %v738 = vadd.f32 0.0, %v737
        %v739 = vpop.f32.mrb[0].mxu0
        %740 = vmatprep.mubr.bf16.mxu0 0
        %741 = vmatmul.mubr.bf16.gmra.mrb[0].mxu0 %v453
        %v742 = vpop.f32.mrb[0].mxu0
        %v743 = vadd.f32 0.0, %v742
        %v744 = vpop.f32.mrb[0].mxu0
        %v745 = vpop.f32.mrb[0].mxu0
        %v746 = vadd.f32 0.0, %v745
        %v747 = vpop.f32.mrb[0].mxu0
        %748 = vmatprep.mubr.bf16.mxu0 0
        %749 = vmatmul.mubr.bf16.gmra.mrb[0].mxu0 %v454
        %v750 = vpop.f32.mrb[0].mxu0
        %v751 = vadd.f32 0.0, %v750
        %v752 = vpop.f32.mrb[0].mxu0
        %v753 = vpop.f32.mrb[0].mxu0
        %v754 = vadd.f32 0.0, %v753
        %v755 = vpop.f32.mrb[0].mxu0
        %756 = vmatprep.mubr.bf16.mxu0 0
        %757 = vmatmul.mubr.bf16.gmra.mrb[0].mxu0 %v455
        %v758 = vpop.f32.mrb[0].mxu0
        %v759 = vadd.f32 0.0, %v758
        %v760 = vpop.f32.mrb[0].mxu0
        %v761 = vpop.f32.mrb[0].mxu0
        %v762 = vadd.f32 0.0, %v761
        %v763 = vpop.f32.mrb[0].mxu0
        %764 = vmatprep.mubr.bf16.mxu0 0
        %765 = vmatmul.mubr.bf16.gmra.mrb[0].mxu0 %v456
        %v766 = vpop.f32.mrb[0].mxu0
        %v767 = vadd.f32 0.0, %v766
        %v768 = vpop.f32.mrb[0].mxu0
        %v769 = vpop.f32.mrb[0].mxu0
        %v770 = vadd.f32 0.0, %v769
        %v771 = vpop.f32.mrb[0].mxu0
        %772 = vmatprep.mubr.bf16.mxu0 0
        %773 = vmatmul.mubr.bf16.gmra.mrb[0].mxu0 %v457
        %v774 = vpop.f32.mrb[0].mxu0
        %v775 = vadd.f32 0.0, %v774
        %v776 = vpop.f32.mrb[0].mxu0
        %v777 = vpop.f32.mrb[0].mxu0
        %v778 = vadd.f32 0.0, %v777
        %v779 = vpop.f32.mrb[0].mxu0
        %780 = vmatprep.mubr.bf16.mxu0 0
        %781 = vmatmul.mubr.bf16.gmra.mrb[0].mxu0 %v458
        %v782 = vpop.f32.mrb[0].mxu0
        %v783 = vadd.f32 0.0, %v782
        %v784 = vpop.f32.mrb[0].mxu0
        %v785 = vpop.f32.mrb[0].mxu0
        %v786 = vadd.f32 0.0, %v785
        %v787 = vpop.f32.mrb[0].mxu0
        %788 = vmatprep.mubr.bf16.mxu0 0
        %789 = vmatmul.mubr.bf16.gmra.mrb[0].mxu0 %v459
        %v790 = vpop.f32.mrb[0].mxu0
        %v791 = vadd.f32 0.0, %v790
        %v792 = vpop.f32.mrb[0].mxu0
        %v793 = vpop.f32.mrb[0].mxu0
        %v794 = vadd.f32 0.0, %v793
        %v795 = vpop.f32.mrb[0].mxu0
        %796 = vmatprep.mubr.bf16.mxu0 0
        %797 = vmatmul.mubr.bf16.gmra.mrb[0].mxu0 %v540
        %v798 = vpop.f32.mrb[0].mxu0
        %v799 = vadd.f32 0.0, %v798
        %v800 = vpop.f32.mrb[0].mxu0
        %v801 = vpop.f32.mrb[0].mxu0
        %v802 = vadd.f32 0.0, %v801
        %v803 = vpop.f32.mrb[0].mxu0
        %804 = vmatprep.mubr.bf16.mxu0 0
        %805 = vmatmul.mubr.bf16.gmra.mrb[0].mxu0 %v541
        %v806 = vpop.f32.mrb[0].mxu0
        %v807 = vadd.f32 0.0, %v806
        %v808 = vpop.f32.mrb[0].mxu0
        %v809 = vpop.f32.mrb[0].mxu0
        %v810 = vadd.f32 0.0, %v809
        %v811 = vpop.f32.mrb[0].mxu0
        %812 = vmatprep.mubr.bf16.mxu0 0
        %813 = vmatmul.mubr.bf16.gmra.mrb[0].mxu0 %v542
        %v814 = vpop.f32.mrb[0].mxu0
        %v815 = vadd.f32 0.0, %v814
        %v816 = vpop.f32.mrb[0].mxu0
        %v817 = vpop.f32.mrb[0].mxu0
        %v818 = vadd.f32 0.0, %v817
        %v819 = vpop.f32.mrb[0].mxu0
        %820 = vmatprep.mubr.bf16.mxu0 0
        %821 = vmatmul.mubr.bf16.gmra.mrb[0].mxu0 %v543
        %v822 = vpop.f32.mrb[0].mxu0
        %v823 = vadd.f32 0.0, %v822
        %v824 = vpop.f32.mrb[0].mxu0
        %v825 = vpop.f32.mrb[0].mxu0
        %v826 = vadd.f32 0.0, %v825
        %v827 = vpop.f32.mrb[0].mxu0
        %828 = vmatprep.mubr.bf16.mxu0 0
        %829 = vmatmul.mubr.bf16.gmra.mrb[0].mxu0 %v544
        %v830 = vpop.f32.mrb[0].mxu0
        %v831 = vadd.f32 0.0, %v830
        %v832 = vpop.f32.mrb[0].mxu0
        %v833 = vpop.f32.mrb[0].mxu0
        %v834 = vadd.f32 0.0, %v833
        %v835 = vpop.f32.mrb[0].mxu0
        %836 = vmatprep.mubr.bf16.mxu0 0
        %837 = vmatmul.mubr.bf16.gmra.mrb[0].mxu0 %v545
        %v838 = vpop.f32.mrb[0].mxu0
        %v839 = vadd.f32 0.0, %v838
        %v840 = vpop.f32.mrb[0].mxu0
        %v841 = vpop.f32.mrb[0].mxu0
        %v842 = vadd.f32 0.0, %v841
        %v843 = vpop.f32.mrb[0].mxu0
        %844 = vmatprep.mubr.bf16.mxu0 0
        %845 = vmatmul.mubr.bf16.gmra.mrb[0].mxu0 %v546
        %v846 = vpop.f32.mrb[0].mxu0
        %v847 = vadd.f32 0.0, %v846
        %v848 = vpop.f32.mrb[0].mxu0
        %v849 = vpop.f32.mrb[0].mxu0
        %v850 = vadd.f32 0.0, %v849
        %v851 = vpop.f32.mrb[0].mxu0
        %852 = vmatprep.mubr.bf16.mxu0 0
        %853 = vmatmul.mubr.bf16.gmra.mrb[0].mxu0 %v547
        %v854 = vpop.f32.mrb[0].mxu0
        %v855 = vadd.f32 0.0, %v854
        %v856 = vpop.f32.mrb[0].mxu0
        %v857 = vpop.f32.mrb[0].mxu0
        %v858 = vadd.f32 0.0, %v857
        %v859 = vpop.f32.mrb[0].mxu0
        %860 = vmatprep.mubr.bf16.mxu0 0
        %861 = vmatmul.mubr.bf16.gmra.mrb[0].mxu0 %v548
        %v862 = vpop.f32.mrb[0].mxu0
        %v863 = vadd.f32 0.0, %v862
        %v864 = vpop.f32.mrb[0].mxu0
        %v865 = vpop.f32.mrb[0].mxu0
        %v866 = vadd.f32 0.0, %v865
        %v867 = vpop.f32.mrb[0].mxu0
        %868 = vmatprep.mubr.bf16.mxu0 0
        %869 = vmatmul.mubr.bf16.gmra.mrb[0].mxu0 %v549
        %v870 = vpop.f32.mrb[0].mxu0
        %v871 = vadd.f32 0.0, %v870
        %v872 = vpop.f32.mrb[0].mxu0
        %v873 = vpop.f32.mrb[0].mxu0
        %v874 = vadd.f32 0.0, %v873
        %v875 = vpop.f32.mrb[0].mxu0
        %876 = vmatprep.mubr.bf16.mxu0 0
        %877 = vmatmul.mubr.bf16.gmra.mrb[0].mxu0 %v550
        %v878 = vpop.f32.mrb[0].mxu0
        %v879 = vadd.f32 0.0, %v878
        %v880 = vpop.f32.mrb[0].mxu0
        %v881 = vpop.f32.mrb[0].mxu0
        %v882 = vadd.f32 0.0, %v881
        %v883 = vpop.f32.mrb[0].mxu0
        %884 = vmatprep.mubr.bf16.mxu0 0
        %885 = vmatmul.mubr.bf16.gmra.mrb[0].mxu0 %v551
        %v886 = vpop.f32.mrb[0].mxu0
        %v887 = vadd.f32 0.0, %v886
        %v888 = vpop.f32.mrb[0].mxu0
        %v889 = vpop.f32.mrb[0].mxu0
        %v890 = vadd.f32 0.0, %v889
        %v891 = vpop.f32.mrb[0].mxu0
        %892 = vmatprep.mubr.bf16.mxu0 0
        %893 = vmatmul.mubr.bf16.gmra.mrb[0].mxu0 %v552
        %v894 = vpop.f32.mrb[0].mxu0
        %v895 = vadd.f32 0.0, %v894
        %v896 = vpop.f32.mrb[0].mxu0
        %v897 = vpop.f32.mrb[0].mxu0
        %v898 = vadd.f32 0.0, %v897
        %v899 = vpop.f32.mrb[0].mxu0
        %900 = vmatprep.mubr.bf16.mxu0 0
        %901 = vmatmul.mubr.bf16.gmra.mrb[0].mxu0 %v553
        %v902 = vpop.f32.mrb[0].mxu0
        %v903 = vadd.f32 0.0, %v902
        %v904 = vpop.f32.mrb[0].mxu0
        %v905 = vpop.f32.mrb[0].mxu0
        %v906 = vadd.f32 0.0, %v905
        %v907 = vpop.f32.mrb[0].mxu0
        %908 = vmatprep.mubr.bf16.mxu0 0
        %909 = vmatmul.mubr.bf16.gmra.mrb[0].mxu0 %v554
        %v910 = vpop.f32.mrb[0].mxu0
        %v911 = vadd.f32 0.0, %v910
        %v912 = vpop.f32.mrb[0].mxu0
        %v913 = vpop.f32.mrb[0].mxu0
        %v914 = vadd.f32 0.0, %v913
        %v915 = vpop.f32.mrb[0].mxu0
        %916 = vmatprep.mubr.bf16.mxu0 0
        %917 = vmatmul.mubr.bf16.gmra.mrb[0].mxu0 %v555
        %v918 = vpop.f32.mrb[0].mxu0
        %v919 = vadd.f32 0.0, %v918
        %v920 = vpop.f32.mrb[0].mxu0
        %v921 = vpop.f32.mrb[0].mxu0
        %v922 = vadd.f32 0.0, %v921
        %v923 = vpop.f32.mrb[0].mxu0
        %924 = vdwg.mxu0
        %v925 = vpack.c.bf16 %v674, %v671
        %v926 = vpack.c.bf16 %v682, %v679
        %v927 = vpack.c.bf16 %v690, %v687
        %v928 = vpack.c.bf16 %v698, %v695
        %v929 = vpack.c.bf16 %v706, %v703
        %v930 = vpack.c.bf16 %v714, %v711
        %v931 = vpack.c.bf16 %v722, %v719
        %v932 = vpack.c.bf16 %v730, %v727
        %v933 = vpack.c.bf16 %v738, %v735
        %v934 = vpack.c.bf16 %v746, %v743
        %v935 = vpack.c.bf16 %v754, %v751
        %v936 = vpack.c.bf16 %v762, %v759
        %v937 = vpack.c.bf16 %v770, %v767
        %v938 = vpack.c.bf16 %v778, %v775
        %v939 = vpack.c.bf16 %v786, %v783
        %v940 = vpack.c.bf16 %v794, %v791
        %v941 = vpack.c.bf16 %v802, %v799
        %v942 = vpack.c.bf16 %v810, %v807
        %v943 = vpack.c.bf16 %v818, %v815
        %v944 = vpack.c.bf16 %v826, %v823
        %v945 = vpack.c.bf16 %v834, %v831
        %v946 = vpack.c.bf16 %v842, %v839
        %v947 = vpack.c.bf16 %v850, %v847
        %v948 = vpack.c.bf16 %v858, %v855
        %v949 = vpack.c.bf16 %v866, %v863
        %v950 = vpack.c.bf16 %v874, %v871
        %v951 = vpack.c.bf16 %v882, %v879
        %v952 = vpack.c.bf16 %v890, %v887
        %v953 = vpack.c.bf16 %v898, %v895
        %v954 = vpack.c.bf16 %v906, %v903
        %v955 = vpack.c.bf16 %v914, %v911
        %v956 = vpack.c.bf16 %v922, %v919
        %v957 = vld [vmem:[%s4] sm:$0x1]
        %v958 = vpack.c.bf16 %v957, %v957
        %v960 = vpack.i.b16 %v958, %v958
        %v962 = vlaneseq
        %v963 = vshrl.u32 %v962, 7
        %v964 = vsub.s32 0, %v963
        %v965 = vrot.slane %v960, %v964
        %v966 = vadd.bf16 %v925, %v965
        %v967 = vadd.bf16 %v926, %v965
        %v968 = vadd.bf16 %v927, %v965
        %v969 = vadd.bf16 %v928, %v965
        %v970 = vadd.bf16 %v929, %v965
        %v971 = vadd.bf16 %v930, %v965
        %v972 = vadd.bf16 %v931, %v965
        %v973 = vadd.bf16 %v932, %v965
        %v974 = vadd.bf16 %v933, %v965
        %v975 = vadd.bf16 %v934, %v965
        %v976 = vadd.bf16 %v935, %v965
        %v977 = vadd.bf16 %v936, %v965
        %v978 = vadd.bf16 %v937, %v965
        %v979 = vadd.bf16 %v938, %v965
        %v980 = vadd.bf16 %v939, %v965
        %v981 = vadd.bf16 %v940, %v965
        %v982 = vadd.bf16 %v941, %v965
        %v983 = vadd.bf16 %v942, %v965
        %v984 = vadd.bf16 %v943, %v965
        %v985 = vadd.bf16 %v944, %v965
        %v986 = vadd.bf16 %v945, %v965
        %v987 = vadd.bf16 %v946, %v965
        %v988 = vadd.bf16 %v947, %v965
        %v989 = vadd.bf16 %v948, %v965
        %v990 = vadd.bf16 %v949, %v965
        %v991 = vadd.bf16 %v950, %v965
        %v992 = vadd.bf16 %v951, %v965
        %v993 = vadd.bf16 %v952, %v965
        %v994 = vadd.bf16 %v953, %v965
        %v995 = vadd.bf16 %v954, %v965
        %v996 = vadd.bf16 %v955, %v965
        %v997 = vadd.bf16 %v956, %v965
        %v998 = vmax.bf16 %v966, 0
        %v999 = vmax.bf16 %v967, 0
        %v1000 = vmax.bf16 %v968, 0
        %v1001 = vmax.bf16 %v969, 0
        %v1002 = vmax.bf16 %v970, 0
        %v1003 = vmax.bf16 %v971, 0
        %v1004 = vmax.bf16 %v972, 0
        %v1005 = vmax.bf16 %v973, 0
        %v1006 = vmax.bf16 %v974, 0
        %v1007 = vmax.bf16 %v975, 0
        %v1008 = vmax.bf16 %v976, 0
        %v1009 = vmax.bf16 %v977, 0
        %v1010 = vmax.bf16 %v978, 0
        %v1011 = vmax.bf16 %v979, 0
        %v1012 = vmax.bf16 %v980, 0
        %v1013 = vmax.bf16 %v981, 0
        %v1014 = vmax.bf16 %v982, 0
        %v1015 = vmax.bf16 %v983, 0
        %v1016 = vmax.bf16 %v984, 0
        %v1017 = vmax.bf16 %v985, 0
        %v1018 = vmax.bf16 %v986, 0
        %v1019 = vmax.bf16 %v987, 0
        %v1020 = vmax.bf16 %v988, 0
        %v1021 = vmax.bf16 %v989, 0
        %v1022 = vmax.bf16 %v990, 0
        %v1023 = vmax.bf16 %v991, 0
        %v1024 = vmax.bf16 %v992, 0
        %v1025 = vmax.bf16 %v993, 0
        %v1026 = vmax.bf16 %v994, 0
        %v1027 = vmax.bf16 %v995, 0
        %v1028 = vmax.bf16 %v996, 0
        %v1029 = vmax.bf16 %v997, 0
        %s1030 = scalar_lea.vmem [#allocation7], 64
        %v1031 = vld [vmem:[%s1030] sm:$0xf]
        %v1032 = vld [vmem:[%s1030 + $0x4] sm:$0xf]
        %v1033 = vld [vmem:[%s1030 + $0x8] sm:$0xf]
        %v1034 = vld [vmem:[%s1030 + $0xc] sm:$0xf]
        %v1035 = vld [vmem:[%s1030 + $0x10] sm:$0xf]
        %v1036 = vld [vmem:[%s1030 + $0x14] sm:$0xf]
        %v1037 = vld [vmem:[%s1030 + $0x18] sm:$0xf]
        %v1038 = vld [vmem:[%s1030 + $0x1c] sm:$0xf]
        %v1039 = vld [vmem:[%s1030 + $0x20] sm:$0xf]
        %v1040 = vld [vmem:[%s1030 + $0x24] sm:$0xf]
        %v1041 = vld [vmem:[%s1030 + $0x28] sm:$0xf]
        %v1042 = vld [vmem:[%s1030 + $0x2c] sm:$0xf]
        %v1043 = vld [vmem:[%s1030 + $0x30] sm:$0xf]
        %v1044 = vld [vmem:[%s1030 + $0x34] sm:$0xf]
        %v1045 = vld [vmem:[%s1030 + $0x38] sm:$0xf]
        %v1046 = vld [vmem:[%s1030 + $0x3c] sm:$0xf]
        %v1063 = vunpack.c.l.b16 %v1031
        %v1064 = vunpack.c.l.b16 %v1032
        %v1065 = vunpack.c.l.b16 %v1033
        %v1066 = vunpack.c.l.b16 %v1034
        %v1067 = vunpack.c.l.b16 %v1035
        %v1068 = vunpack.c.l.b16 %v1036
        %v1069 = vunpack.c.l.b16 %v1037
        %v1070 = vunpack.c.l.b16 %v1038
        %v1071 = vunpack.c.l.b16 %v1039
        %v1072 = vunpack.c.l.b16 %v1040
        %v1073 = vunpack.c.l.b16 %v1041
        %v1074 = vunpack.c.l.b16 %v1042
        %v1075 = vunpack.c.l.b16 %v1043
        %v1076 = vunpack.c.l.b16 %v1044
        %v1077 = vunpack.c.l.b16 %v1045
        %v1078 = vunpack.c.l.b16 %v1046
        %v1079 = vpack.c.b16 %v1064, %v1063
        %v1080 = vpack.c.b16 %v1066, %v1065
        %v1081 = vpack.c.b16 %v1068, %v1067
        %v1082 = vpack.c.b16 %v1070, %v1069
        %v1083 = vpack.c.b16 %v1072, %v1071
        %v1084 = vpack.c.b16 %v1074, %v1073
        %v1085 = vpack.c.b16 %v1076, %v1075
        %v1086 = vpack.c.b16 %v1078, %v1077
        %1095 = vmatprep.subr.bf16.mxu0 0
        %1096 = vmatpush1.bf16.msra.mxu0 %v1079
        %1097 = vmatprep.subr.bf16.mxu0 0
        %1098 = vmatpush1.bf16.msra.mxu0 %v1080
        %1099 = vmatprep.subr.bf16.mxu0 0
        %1100 = vmatpush1.bf16.msra.mxu0 %v1081
        %1101 = vmatprep.subr.bf16.mxu0 0
        %1102 = vmatpush1.bf16.msra.mxu0 %v1082
        %1103 = vmatprep.subr.bf16.mxu0 0
        %1104 = vmatpush1.bf16.msra.mxu0 %v1083
        %1105 = vmatprep.subr.bf16.mxu0 0
        %1106 = vmatpush1.bf16.msra.mxu0 %v1084
        %1107 = vmatprep.subr.bf16.mxu0 0
        %1108 = vmatpush1.bf16.msra.mxu0 %v1085
        %1109 = vmatprep.subr.bf16.mxu0 0
        %1110 = vmatpush1.bf16.msra.mxu0 %v1086
        %1111 = vmatprep.subr.bf16.mxu0 0
        %1112 = vmatpush1.bf16.msra.mxu0 0
        %1113 = vmatprep.subr.bf16.mxu0 0
        %1114 = vmatpush1.bf16.msra.mxu0 0
        %1115 = vmatprep.subr.bf16.mxu0 0
        %1116 = vmatpush1.bf16.msra.mxu0 0
        %1117 = vmatprep.subr.bf16.mxu0 0
        %1118 = vmatpush1.bf16.msra.mxu0 0
        %1119 = vmatprep.subr.bf16.mxu0 0
        %1120 = vmatpush1.bf16.msra.mxu0 0
        %1121 = vmatprep.subr.bf16.mxu0 0
        %1122 = vmatpush1.bf16.msra.mxu0 0
        %1123 = vmatprep.subr.bf16.mxu0 0
        %1124 = vmatpush1.bf16.msra.mxu0 0
        %1125 = vmatprep.subr.bf16.mxu0 0
        %1126 = vmatpush1.bf16.msra.mxu0 0
        %1127 = vmatprep.mubr.bf16.mxu0 0
        %1128 = vmatmul.mubr.bf16.gmra.mrb[0].mxu0 %v998
        %v1129 = vpop.f32.mrb[0].mxu0
        %v1130 = vadd.f32 0.0, %v1129
        %v1131 = vpop.f32.mrb[0].mxu0
        %v1132 = vpop.f32.mrb[0].mxu0
        %v1133 = vadd.f32 0.0, %v1132
        %v1134 = vpop.f32.mrb[0].mxu0
        %1135 = vmatprep.mubr.bf16.mxu0 0
        %1136 = vmatmul.mubr.bf16.gmra.mrb[0].mxu0 %v999
        %v1137 = vpop.f32.mrb[0].mxu0
        %v1138 = vadd.f32 0.0, %v1137
        %v1139 = vpop.f32.mrb[0].mxu0
        %v1140 = vpop.f32.mrb[0].mxu0
        %v1141 = vadd.f32 0.0, %v1140
        %v1142 = vpop.f32.mrb[0].mxu0
        %1143 = vmatprep.mubr.bf16.mxu0 0
        %1144 = vmatmul.mubr.bf16.gmra.mrb[0].mxu0 %v1000
        %v1145 = vpop.f32.mrb[0].mxu0
        %v1146 = vadd.f32 0.0, %v1145
        %v1147 = vpop.f32.mrb[0].mxu0
        %v1148 = vpop.f32.mrb[0].mxu0
        %v1149 = vadd.f32 0.0, %v1148
        %v1150 = vpop.f32.mrb[0].mxu0
        %1151 = vmatprep.mubr.bf16.mxu0 0
        %1152 = vmatmul.mubr.bf16.gmra.mrb[0].mxu0 %v1001
        %v1153 = vpop.f32.mrb[0].mxu0
        %v1154 = vadd.f32 0.0, %v1153
        %v1155 = vpop.f32.mrb[0].mxu0
        %v1156 = vpop.f32.mrb[0].mxu0
        %v1157 = vadd.f32 0.0, %v1156
        %v1158 = vpop.f32.mrb[0].mxu0
        %1159 = vmatprep.mubr.bf16.mxu0 0
        %1160 = vmatmul.mubr.bf16.gmra.mrb[0].mxu0 %v1002
        %v1161 = vpop.f32.mrb[0].mxu0
        %v1162 = vadd.f32 0.0, %v1161
        %v1163 = vpop.f32.mrb[0].mxu0
        %v1164 = vpop.f32.mrb[0].mxu0
        %v1165 = vadd.f32 0.0, %v1164
        %v1166 = vpop.f32.mrb[0].mxu0
        %1167 = vmatprep.mubr.bf16.mxu0 0
        %1168 = vmatmul.mubr.bf16.gmra.mrb[0].mxu0 %v1003
        %v1169 = vpop.f32.mrb[0].mxu0
        %v1170 = vadd.f32 0.0, %v1169
        %v1171 = vpop.f32.mrb[0].mxu0
        %v1172 = vpop.f32.mrb[0].mxu0
        %v1173 = vadd.f32 0.0, %v1172
        %v1174 = vpop.f32.mrb[0].mxu0
        %1175 = vmatprep.mubr.bf16.mxu0 0
        %1176 = vmatmul.mubr.bf16.gmra.mrb[0].mxu0 %v1004
        %v1177 = vpop.f32.mrb[0].mxu0
        %v1178 = vadd.f32 0.0, %v1177
        %v1179 = vpop.f32.mrb[0].mxu0
        %v1180 = vpop.f32.mrb[0].mxu0
        %v1181 = vadd.f32 0.0, %v1180
        %v1182 = vpop.f32.mrb[0].mxu0
        %1183 = vmatprep.mubr.bf16.mxu0 0
        %1184 = vmatmul.mubr.bf16.gmra.mrb[0].mxu0 %v1005
        %v1185 = vpop.f32.mrb[0].mxu0
        %v1186 = vadd.f32 0.0, %v1185
        %v1187 = vpop.f32.mrb[0].mxu0
        %v1188 = vpop.f32.mrb[0].mxu0
        %v1189 = vadd.f32 0.0, %v1188
        %v1190 = vpop.f32.mrb[0].mxu0
        %1191 = vmatprep.mubr.bf16.mxu0 0
        %1192 = vmatmul.mubr.bf16.gmra.mrb[0].mxu0 %v1006
        %v1193 = vpop.f32.mrb[0].mxu0
        %v1194 = vadd.f32 0.0, %v1193
        %v1195 = vpop.f32.mrb[0].mxu0
        %v1196 = vpop.f32.mrb[0].mxu0
        %v1197 = vadd.f32 0.0, %v1196
        %v1198 = vpop.f32.mrb[0].mxu0
        %1199 = vmatprep.mubr.bf16.mxu0 0
        %1200 = vmatmul.mubr.bf16.gmra.mrb[0].mxu0 %v1007
        %v1201 = vpop.f32.mrb[0].mxu0
        %v1202 = vadd.f32 0.0, %v1201
        %v1203 = vpop.f32.mrb[0].mxu0
        %v1204 = vpop.f32.mrb[0].mxu0
        %v1205 = vadd.f32 0.0, %v1204
        %v1206 = vpop.f32.mrb[0].mxu0
        %1207 = vmatprep.mubr.bf16.mxu0 0
        %1208 = vmatmul.mubr.bf16.gmra.mrb[0].mxu0 %v1008
        %v1209 = vpop.f32.mrb[0].mxu0
        %v1210 = vadd.f32 0.0, %v1209
        %v1211 = vpop.f32.mrb[0].mxu0
        %v1212 = vpop.f32.mrb[0].mxu0
        %v1213 = vadd.f32 0.0, %v1212
        %v1214 = vpop.f32.mrb[0].mxu0
        %1215 = vmatprep.mubr.bf16.mxu0 0
        %1216 = vmatmul.mubr.bf16.gmra.mrb[0].mxu0 %v1009
        %v1217 = vpop.f32.mrb[0].mxu0
        %v1218 = vadd.f32 0.0, %v1217
        %v1219 = vpop.f32.mrb[0].mxu0
        %v1220 = vpop.f32.mrb[0].mxu0
        %v1221 = vadd.f32 0.0, %v1220
        %v1222 = vpop.f32.mrb[0].mxu0
        %1223 = vmatprep.mubr.bf16.mxu0 0
        %1224 = vmatmul.mubr.bf16.gmra.mrb[0].mxu0 %v1010
        %v1225 = vpop.f32.mrb[0].mxu0
        %v1226 = vadd.f32 0.0, %v1225
        %v1227 = vpop.f32.mrb[0].mxu0
        %v1228 = vpop.f32.mrb[0].mxu0
        %v1229 = vadd.f32 0.0, %v1228
        %v1230 = vpop.f32.mrb[0].mxu0
        %1231 = vmatprep.mubr.bf16.mxu0 0
        %1232 = vmatmul.mubr.bf16.gmra.mrb[0].mxu0 %v1011
        %v1233 = vpop.f32.mrb[0].mxu0
        %v1234 = vadd.f32 0.0, %v1233
        %v1235 = vpop.f32.mrb[0].mxu0
        %v1236 = vpop.f32.mrb[0].mxu0
        %v1237 = vadd.f32 0.0, %v1236
        %v1238 = vpop.f32.mrb[0].mxu0
        %1239 = vmatprep.mubr.bf16.mxu0 0
        %1240 = vmatmul.mubr.bf16.gmra.mrb[0].mxu0 %v1012
        %v1241 = vpop.f32.mrb[0].mxu0
        %v1242 = vadd.f32 0.0, %v1241
        %v1243 = vpop.f32.mrb[0].mxu0
        %v1244 = vpop.f32.mrb[0].mxu0
        %v1245 = vadd.f32 0.0, %v1244
        %v1246 = vpop.f32.mrb[0].mxu0
        %1247 = vmatprep.mubr.bf16.mxu0 0
        %1248 = vmatmul.mubr.bf16.gmra.mrb[0].mxu0 %v1013
        %v1249 = vpop.f32.mrb[0].mxu0
        %v1250 = vadd.f32 0.0, %v1249
        %v1251 = vpop.f32.mrb[0].mxu0
        %v1252 = vpop.f32.mrb[0].mxu0
        %v1253 = vadd.f32 0.0, %v1252
        %v1254 = vpop.f32.mrb[0].mxu0
        %1255 = vmatprep.mubr.bf16.mxu0 0
        %1256 = vmatmul.mubr.bf16.gmra.mrb[0].mxu0 %v1014
        %v1257 = vpop.f32.mrb[0].mxu0
        %v1258 = vadd.f32 0.0, %v1257
        %v1259 = vpop.f32.mrb[0].mxu0
        %v1260 = vpop.f32.mrb[0].mxu0
        %v1261 = vadd.f32 0.0, %v1260
        %v1262 = vpop.f32.mrb[0].mxu0
        %1263 = vmatprep.mubr.bf16.mxu0 0
        %1264 = vmatmul.mubr.bf16.gmra.mrb[0].mxu0 %v1015
        %v1265 = vpop.f32.mrb[0].mxu0
        %v1266 = vadd.f32 0.0, %v1265
        %v1267 = vpop.f32.mrb[0].mxu0
        %v1268 = vpop.f32.mrb[0].mxu0
        %v1269 = vadd.f32 0.0, %v1268
        %v1270 = vpop.f32.mrb[0].mxu0
        %1271 = vmatprep.mubr.bf16.mxu0 0
        %1272 = vmatmul.mubr.bf16.gmra.mrb[0].mxu0 %v1016
        %v1273 = vpop.f32.mrb[0].mxu0
        %v1274 = vadd.f32 0.0, %v1273
        %v1275 = vpop.f32.mrb[0].mxu0
        %v1276 = vpop.f32.mrb[0].mxu0
        %v1277 = vadd.f32 0.0, %v1276
        %v1278 = vpop.f32.mrb[0].mxu0
        %1279 = vmatprep.mubr.bf16.mxu0 0
        %1280 = vmatmul.mubr.bf16.gmra.mrb[0].mxu0 %v1017
        %v1281 = vpop.f32.mrb[0].mxu0
        %v1282 = vadd.f32 0.0, %v1281
        %v1283 = vpop.f32.mrb[0].mxu0
        %v1284 = vpop.f32.mrb[0].mxu0
        %v1285 = vadd.f32 0.0, %v1284
        %v1286 = vpop.f32.mrb[0].mxu0
        %1287 = vmatprep.mubr.bf16.mxu0 0
        %1288 = vmatmul.mubr.bf16.gmra.mrb[0].mxu0 %v1018
        %v1289 = vpop.f32.mrb[0].mxu0
        %v1290 = vadd.f32 0.0, %v1289
        %v1291 = vpop.f32.mrb[0].mxu0
        %v1292 = vpop.f32.mrb[0].mxu0
        %v1293 = vadd.f32 0.0, %v1292
        %v1294 = vpop.f32.mrb[0].mxu0
        %1295 = vmatprep.mubr.bf16.mxu0 0
        %1296 = vmatmul.mubr.bf16.gmra.mrb[0].mxu0 %v1019
        %v1297 = vpop.f32.mrb[0].mxu0
        %v1298 = vadd.f32 0.0, %v1297
        %v1299 = vpop.f32.mrb[0].mxu0
        %v1300 = vpop.f32.mrb[0].mxu0
        %v1301 = vadd.f32 0.0, %v1300
        %v1302 = vpop.f32.mrb[0].mxu0
        %1303 = vmatprep.mubr.bf16.mxu0 0
        %1304 = vmatmul.mubr.bf16.gmra.mrb[0].mxu0 %v1020
        %v1305 = vpop.f32.mrb[0].mxu0
        %v1306 = vadd.f32 0.0, %v1305
        %v1307 = vpop.f32.mrb[0].mxu0
        %v1308 = vpop.f32.mrb[0].mxu0
        %v1309 = vadd.f32 0.0, %v1308
        %v1310 = vpop.f32.mrb[0].mxu0
        %1311 = vmatprep.mubr.bf16.mxu0 0
        %1312 = vmatmul.mubr.bf16.gmra.mrb[0].mxu0 %v1021
        %v1313 = vpop.f32.mrb[0].mxu0
        %v1314 = vadd.f32 0.0, %v1313
        %v1315 = vpop.f32.mrb[0].mxu0
        %v1316 = vpop.f32.mrb[0].mxu0
        %v1317 = vadd.f32 0.0, %v1316
        %v1318 = vpop.f32.mrb[0].mxu0
        %1319 = vmatprep.mubr.bf16.mxu0 0
        %1320 = vmatmul.mubr.bf16.gmra.mrb[0].mxu0 %v1022
        %v1321 = vpop.f32.mrb[0].mxu0
        %v1322 = vadd.f32 0.0, %v1321
        %v1323 = vpop.f32.mrb[0].mxu0
        %v1324 = vpop.f32.mrb[0].mxu0
        %v1325 = vadd.f32 0.0, %v1324
        %v1326 = vpop.f32.mrb[0].mxu0
        %1327 = vmatprep.mubr.bf16.mxu0 0
        %1328 = vmatmul.mubr.bf16.gmra.mrb[0].mxu0 %v1023
        %v1329 = vpop.f32.mrb[0].mxu0
        %v1330 = vadd.f32 0.0, %v1329
        %v1331 = vpop.f32.mrb[0].mxu0
        %v1332 = vpop.f32.mrb[0].mxu0
        %v1333 = vadd.f32 0.0, %v1332
        %v1334 = vpop.f32.mrb[0].mxu0
        %1335 = vmatprep.mubr.bf16.mxu0 0
        %1336 = vmatmul.mubr.bf16.gmra.mrb[0].mxu0 %v1024
        %v1337 = vpop.f32.mrb[0].mxu0
        %v1338 = vadd.f32 0.0, %v1337
        %v1339 = vpop.f32.mrb[0].mxu0
        %v1340 = vpop.f32.mrb[0].mxu0
        %v1341 = vadd.f32 0.0, %v1340
        %v1342 = vpop.f32.mrb[0].mxu0
        %1343 = vmatprep.mubr.bf16.mxu0 0
        %1344 = vmatmul.mubr.bf16.gmra.mrb[0].mxu0 %v1025
        %v1345 = vpop.f32.mrb[0].mxu0
        %v1346 = vadd.f32 0.0, %v1345
        %v1347 = vpop.f32.mrb[0].mxu0
        %v1348 = vpop.f32.mrb[0].mxu0
        %v1349 = vadd.f32 0.0, %v1348
        %v1350 = vpop.f32.mrb[0].mxu0
        %1351 = vmatprep.mubr.bf16.mxu0 0
        %1352 = vmatmul.mubr.bf16.gmra.mrb[0].mxu0 %v1026
        %v1353 = vpop.f32.mrb[0].mxu0
        %v1354 = vadd.f32 0.0, %v1353
        %v1355 = vpop.f32.mrb[0].mxu0
        %v1356 = vpop.f32.mrb[0].mxu0
        %v1357 = vadd.f32 0.0, %v1356
        %v1358 = vpop.f32.mrb[0].mxu0
        %1359 = vmatprep.mubr.bf16.mxu0 0
        %1360 = vmatmul.mubr.bf16.gmra.mrb[0].mxu0 %v1027
        %v1361 = vpop.f32.mrb[0].mxu0
        %v1362 = vadd.f32 0.0, %v1361
        %v1363 = vpop.f32.mrb[0].mxu0
        %v1364 = vpop.f32.mrb[0].mxu0
        %v1365 = vadd.f32 0.0, %v1364
        %v1366 = vpop.f32.mrb[0].mxu0
        %1367 = vmatprep.mubr.bf16.mxu0 0
        %1368 = vmatmul.mubr.bf16.gmra.mrb[0].mxu0 %v1028
        %v1369 = vpop.f32.mrb[0].mxu0
        %v1370 = vadd.f32 0.0, %v1369
        %v1371 = vpop.f32.mrb[0].mxu0
        %v1372 = vpop.f32.mrb[0].mxu0
        %v1373 = vadd.f32 0.0, %v1372
        %v1374 = vpop.f32.mrb[0].mxu0
        %1375 = vmatprep.mubr.bf16.mxu0 0
        %1376 = vmatmul.mubr.bf16.gmra.mrb[0].mxu0 %v1029
        %v1377 = vpop.f32.mrb[0].mxu0
        %v1378 = vadd.f32 0.0, %v1377
        %v1379 = vpop.f32.mrb[0].mxu0
        %v1380 = vpop.f32.mrb[0].mxu0
        %v1381 = vadd.f32 0.0, %v1380
        %v1382 = vpop.f32.mrb[0].mxu0
        %1383 = vdwg.mxu0
        %v1384 = vpack.c.bf16 %v1133, %v1130
        %v1385 = vpack.c.bf16 %v1141, %v1138
        %v1386 = vpack.c.bf16 %v1149, %v1146
        %v1387 = vpack.c.bf16 %v1157, %v1154
        %v1388 = vpack.c.bf16 %v1165, %v1162
        %v1389 = vpack.c.bf16 %v1173, %v1170
        %v1390 = vpack.c.bf16 %v1181, %v1178
        %v1391 = vpack.c.bf16 %v1189, %v1186
        %v1392 = vpack.c.bf16 %v1197, %v1194
        %v1393 = vpack.c.bf16 %v1205, %v1202
        %v1394 = vpack.c.bf16 %v1213, %v1210
        %v1395 = vpack.c.bf16 %v1221, %v1218
        %v1396 = vpack.c.bf16 %v1229, %v1226
        %v1397 = vpack.c.bf16 %v1237, %v1234
        %v1398 = vpack.c.bf16 %v1245, %v1242
        %v1399 = vpack.c.bf16 %v1253, %v1250
        %v1400 = vpack.c.bf16 %v1261, %v1258
        %v1401 = vpack.c.bf16 %v1269, %v1266
        %v1402 = vpack.c.bf16 %v1277, %v1274
        %v1403 = vpack.c.bf16 %v1285, %v1282
        %v1404 = vpack.c.bf16 %v1293, %v1290
        %v1405 = vpack.c.bf16 %v1301, %v1298
        %v1406 = vpack.c.bf16 %v1309, %v1306
        %v1407 = vpack.c.bf16 %v1317, %v1314
        %v1408 = vpack.c.bf16 %v1325, %v1322
        %v1409 = vpack.c.bf16 %v1333, %v1330
        %v1410 = vpack.c.bf16 %v1341, %v1338
        %v1411 = vpack.c.bf16 %v1349, %v1346
        %v1412 = vpack.c.bf16 %v1357, %v1354
        %v1413 = vpack.c.bf16 %v1365, %v1362
        %v1414 = vpack.c.bf16 %v1373, %v1370
        %v1415 = vpack.c.bf16 %v1381, %v1378
        %v1416 = vld [vmem:[%s4 + $0x1] sm:$0x1]
        %v1417 = vpack.c.bf16 %v1416, %v1416
        %v1419 = vpack.i.b16 %v1417, %v1417
        %v1421 = vlaneseq
        %v1422 = vshrl.u32 %v1421, 7
        %v1423 = vsub.s32 0, %v1422
        %v1424 = vrot.slane %v1419, %v1423
        %v1425 = vadd.bf16 %v1384, %v1424
        %v1426 = vadd.bf16 %v1385, %v1424
        %v1427 = vadd.bf16 %v1386, %v1424
        %v1428 = vadd.bf16 %v1387, %v1424
        %v1429 = vadd.bf16 %v1388, %v1424
        %v1430 = vadd.bf16 %v1389, %v1424
        %v1431 = vadd.bf16 %v1390, %v1424
        %v1432 = vadd.bf16 %v1391, %v1424
        %v1433 = vadd.bf16 %v1392, %v1424
        %v1434 = vadd.bf16 %v1393, %v1424
        %v1435 = vadd.bf16 %v1394, %v1424
        %v1436 = vadd.bf16 %v1395, %v1424
        %v1437 = vadd.bf16 %v1396, %v1424
        %v1438 = vadd.bf16 %v1397, %v1424
        %v1439 = vadd.bf16 %v1398, %v1424
        %v1440 = vadd.bf16 %v1399, %v1424
        %v1441 = vadd.bf16 %v1400, %v1424
        %v1442 = vadd.bf16 %v1401, %v1424
        %v1443 = vadd.bf16 %v1402, %v1424
        %v1444 = vadd.bf16 %v1403, %v1424
        %v1445 = vadd.bf16 %v1404, %v1424
        %v1446 = vadd.bf16 %v1405, %v1424
        %v1447 = vadd.bf16 %v1406, %v1424
        %v1448 = vadd.bf16 %v1407, %v1424
        %v1449 = vadd.bf16 %v1408, %v1424
        %v1450 = vadd.bf16 %v1409, %v1424
        %v1451 = vadd.bf16 %v1410, %v1424
        %v1452 = vadd.bf16 %v1411, %v1424
        %v1453 = vadd.bf16 %v1412, %v1424
        %v1454 = vadd.bf16 %v1413, %v1424
        %v1455 = vadd.bf16 %v1414, %v1424
        %v1456 = vadd.bf16 %v1415, %v1424
        %v1457 = vmax.bf16 %v1425, 0
        %v1458 = vmax.bf16 %v1426, 0
        %v1459 = vmax.bf16 %v1427, 0
        %v1460 = vmax.bf16 %v1428, 0
        %v1461 = vmax.bf16 %v1429, 0
        %v1462 = vmax.bf16 %v1430, 0
        %v1463 = vmax.bf16 %v1431, 0
        %v1464 = vmax.bf16 %v1432, 0
        %v1465 = vmax.bf16 %v1433, 0
        %v1466 = vmax.bf16 %v1434, 0
        %v1467 = vmax.bf16 %v1435, 0
        %v1468 = vmax.bf16 %v1436, 0
        %v1469 = vmax.bf16 %v1437, 0
        %v1470 = vmax.bf16 %v1438, 0
        %v1471 = vmax.bf16 %v1439, 0
        %v1472 = vmax.bf16 %v1440, 0
        %v1473 = vmax.bf16 %v1441, 0
        %v1474 = vmax.bf16 %v1442, 0
        %v1475 = vmax.bf16 %v1443, 0
        %v1476 = vmax.bf16 %v1444, 0
        %v1477 = vmax.bf16 %v1445, 0
        %v1478 = vmax.bf16 %v1446, 0
        %v1479 = vmax.bf16 %v1447, 0
        %v1480 = vmax.bf16 %v1448, 0
        %v1481 = vmax.bf16 %v1449, 0
        %v1482 = vmax.bf16 %v1450, 0
        %v1483 = vmax.bf16 %v1451, 0
        %v1484 = vmax.bf16 %v1452, 0
        %v1485 = vmax.bf16 %v1453, 0
        %v1486 = vmax.bf16 %v1454, 0
        %v1487 = vmax.bf16 %v1455, 0
        %v1488 = vmax.bf16 %v1456, 0
        %v1489 = vld [vmem:[#allocation8] sm:$0xf]
        %v1490 = vld [vmem:[#allocation8 + $0x4] sm:$0xf]
        %v1491 = vld [vmem:[#allocation8 + $0x8] sm:$0xf]
        %v1492 = vld [vmem:[#allocation8 + $0xc] sm:$0xf]
        %v1493 = vld [vmem:[#allocation8 + $0x10] sm:$0xf]
        %v1494 = vld [vmem:[#allocation8 + $0x14] sm:$0xf]
        %v1495 = vld [vmem:[#allocation8 + $0x18] sm:$0xf]
        %v1496 = vld [vmem:[#allocation8 + $0x1c] sm:$0xf]
        %v1497 = vld [vmem:[#allocation8 + $0x20] sm:$0xf]
        %v1498 = vld [vmem:[#allocation8 + $0x24] sm:$0xf]
        %v1499 = vld [vmem:[#allocation8 + $0x28] sm:$0xf]
        %v1500 = vld [vmem:[#allocation8 + $0x2c] sm:$0xf]
        %v1501 = vld [vmem:[#allocation8 + $0x30] sm:$0xf]
        %v1502 = vld [vmem:[#allocation8 + $0x34] sm:$0xf]
        %v1503 = vld [vmem:[#allocation8 + $0x38] sm:$0xf]
        %v1504 = vld [vmem:[#allocation8 + $0x3c] sm:$0xf]
        %v1505 = vld [vmem:[#allocation8 + $0x40] sm:$0xf]
        %v1506 = vld [vmem:[#allocation8 + $0x44] sm:$0xf]
        %v1507 = vld [vmem:[#allocation8 + $0x48] sm:$0xf]
        %v1508 = vld [vmem:[#allocation8 + $0x4c] sm:$0xf]
        %v1509 = vld [vmem:[#allocation8 + $0x50] sm:$0xf]
        %v1510 = vld [vmem:[#allocation8 + $0x54] sm:$0xf]
        %v1511 = vld [vmem:[#allocation8 + $0x58] sm:$0xf]
        %v1512 = vld [vmem:[#allocation8 + $0x5c] sm:$0xf]
        %v1513 = vld [vmem:[#allocation8 + $0x60] sm:$0xf]
        %v1514 = vld [vmem:[#allocation8 + $0x64] sm:$0xf]
        %v1515 = vld [vmem:[#allocation8 + $0x68] sm:$0xf]
        %v1516 = vld [vmem:[#allocation8 + $0x6c] sm:$0xf]
        %v1517 = vld [vmem:[#allocation8 + $0x70] sm:$0xf]
        %v1518 = vld [vmem:[#allocation8 + $0x74] sm:$0xf]
        %v1519 = vld [vmem:[#allocation8 + $0x78] sm:$0xf]
        %v1520 = vld [vmem:[#allocation8 + $0x7c] sm:$0xf]
        %v1553 = vunpack.c.l.b16 %v1489
        %v1554 = vunpack.c.l.b16 %v1490
        %v1555 = vunpack.c.l.b16 %v1491
        %v1556 = vunpack.c.l.b16 %v1492
        %v1557 = vunpack.c.l.b16 %v1493
        %v1558 = vunpack.c.l.b16 %v1494
        %v1559 = vunpack.c.l.b16 %v1495
        %v1560 = vunpack.c.l.b16 %v1496
        %v1561 = vunpack.c.l.b16 %v1497
        %v1562 = vunpack.c.l.b16 %v1498
        %v1563 = vunpack.c.l.b16 %v1499
        %v1564 = vunpack.c.l.b16 %v1500
        %v1565 = vunpack.c.l.b16 %v1501
        %v1566 = vunpack.c.l.b16 %v1502
        %v1567 = vunpack.c.l.b16 %v1503
        %v1568 = vunpack.c.l.b16 %v1504
        %v1569 = vunpack.c.l.b16 %v1505
        %v1570 = vunpack.c.l.b16 %v1506
        %v1571 = vunpack.c.l.b16 %v1507
        %v1572 = vunpack.c.l.b16 %v1508
        %v1573 = vunpack.c.l.b16 %v1509
        %v1574 = vunpack.c.l.b16 %v1510
        %v1575 = vunpack.c.l.b16 %v1511
        %v1576 = vunpack.c.l.b16 %v1512
        %v1577 = vunpack.c.l.b16 %v1513
        %v1578 = vunpack.c.l.b16 %v1514
        %v1579 = vunpack.c.l.b16 %v1515
        %v1580 = vunpack.c.l.b16 %v1516
        %v1581 = vunpack.c.l.b16 %v1517
        %v1582 = vunpack.c.l.b16 %v1518
        %v1583 = vunpack.c.l.b16 %v1519
        %v1584 = vunpack.c.l.b16 %v1520
        %v1585 = vpack.c.b16 %v1554, %v1553
        %v1586 = vpack.c.b16 %v1556, %v1555
        %v1587 = vpack.c.b16 %v1558, %v1557
        %v1588 = vpack.c.b16 %v1560, %v1559
        %v1589 = vpack.c.b16 %v1562, %v1561
        %v1590 = vpack.c.b16 %v1564, %v1563
        %v1591 = vpack.c.b16 %v1566, %v1565
        %v1592 = vpack.c.b16 %v1568, %v1567
        %v1593 = vpack.c.b16 %v1570, %v1569
        %v1594 = vpack.c.b16 %v1572, %v1571
        %v1595 = vpack.c.b16 %v1574, %v1573
        %v1596 = vpack.c.b16 %v1576, %v1575
        %v1597 = vpack.c.b16 %v1578, %v1577
        %v1598 = vpack.c.b16 %v1580, %v1579
        %v1599 = vpack.c.b16 %v1582, %v1581
        %v1600 = vpack.c.b16 %v1584, %v1583
        %1617 = vmatprep.subr.bf16.mxu0 0
        %1618 = vmatpush1.bf16.msra.mxu0 %v1585
        %1619 = vmatprep.subr.bf16.mxu0 0
        %1620 = vmatpush1.bf16.msra.mxu0 %v1586
        %1621 = vmatprep.subr.bf16.mxu0 0
        %1622 = vmatpush1.bf16.msra.mxu0 %v1587
        %1623 = vmatprep.subr.bf16.mxu0 0
        %1624 = vmatpush1.bf16.msra.mxu0 %v1588
        %1625 = vmatprep.subr.bf16.mxu0 0
        %1626 = vmatpush1.bf16.msra.mxu0 %v1589
        %1627 = vmatprep.subr.bf16.mxu0 0
        %1628 = vmatpush1.bf16.msra.mxu0 %v1590
        %1629 = vmatprep.subr.bf16.mxu0 0
        %1630 = vmatpush1.bf16.msra.mxu0 %v1591
        %1631 = vmatprep.subr.bf16.mxu0 0
        %1632 = vmatpush1.bf16.msra.mxu0 %v1592
        %1633 = vmatprep.subr.bf16.mxu0 0
        %1634 = vmatpush1.bf16.msra.mxu0 %v1593
        %1635 = vmatprep.subr.bf16.mxu0 0
        %1636 = vmatpush1.bf16.msra.mxu0 %v1594
        %1637 = vmatprep.subr.bf16.mxu0 0
        %1638 = vmatpush1.bf16.msra.mxu0 %v1595
        %1639 = vmatprep.subr.bf16.mxu0 0
        %1640 = vmatpush1.bf16.msra.mxu0 %v1596
        %1641 = vmatprep.subr.bf16.mxu0 0
        %1642 = vmatpush1.bf16.msra.mxu0 %v1597
        %1643 = vmatprep.subr.bf16.mxu0 0
        %1644 = vmatpush1.bf16.msra.mxu0 %v1598
        %1645 = vmatprep.subr.bf16.mxu0 0
        %1646 = vmatpush1.bf16.msra.mxu0 %v1599
        %1647 = vmatprep.subr.bf16.mxu0 0
        %1648 = vmatpush1.bf16.msra.mxu0 %v1600
        %1649 = vmatprep.mubr.bf16.mxu0 %v1473
        %1650 = vmatmul.mubr.bf16.gmra.mrb[0].mxu0 %v1457
        %v1651 = vpop.f32.mrb[0].mxu0
        %v1652 = vadd.f32 0.0, %v1651
        %v1653 = vpop.f32.mrb[0].mxu0
        %v1654 = vpop.f32.mrb[0].mxu0
        %v1655 = vadd.f32 0.0, %v1654
        %v1656 = vpop.f32.mrb[0].mxu0
        %1657 = vmatprep.mubr.bf16.mxu0 %v1474
        %1658 = vmatmul.mubr.bf16.gmra.mrb[0].mxu0 %v1458
        %v1659 = vpop.f32.mrb[0].mxu0
        %v1660 = vadd.f32 0.0, %v1659
        %v1661 = vpop.f32.mrb[0].mxu0
        %v1662 = vpop.f32.mrb[0].mxu0
        %v1663 = vadd.f32 0.0, %v1662
        %v1664 = vpop.f32.mrb[0].mxu0
        %1665 = vmatprep.mubr.bf16.mxu0 %v1475
        %1666 = vmatmul.mubr.bf16.gmra.mrb[0].mxu0 %v1459
        %v1667 = vpop.f32.mrb[0].mxu0
        %v1668 = vadd.f32 0.0, %v1667
        %v1669 = vpop.f32.mrb[0].mxu0
        %v1670 = vpop.f32.mrb[0].mxu0
        %v1671 = vadd.f32 0.0, %v1670
        %v1672 = vpop.f32.mrb[0].mxu0
        %1673 = vmatprep.mubr.bf16.mxu0 %v1476
        %1674 = vmatmul.mubr.bf16.gmra.mrb[0].mxu0 %v1460
        %v1675 = vpop.f32.mrb[0].mxu0
        %v1676 = vadd.f32 0.0, %v1675
        %v1677 = vpop.f32.mrb[0].mxu0
        %v1678 = vpop.f32.mrb[0].mxu0
        %v1679 = vadd.f32 0.0, %v1678
        %v1680 = vpop.f32.mrb[0].mxu0
        %1681 = vmatprep.mubr.bf16.mxu0 %v1477
        %1682 = vmatmul.mubr.bf16.gmra.mrb[0].mxu0 %v1461
        %v1683 = vpop.f32.mrb[0].mxu0
        %v1684 = vadd.f32 0.0, %v1683
        %v1685 = vpop.f32.mrb[0].mxu0
        %v1686 = vpop.f32.mrb[0].mxu0
        %v1687 = vadd.f32 0.0, %v1686
        %v1688 = vpop.f32.mrb[0].mxu0
        %1689 = vmatprep.mubr.bf16.mxu0 %v1478
        %1690 = vmatmul.mubr.bf16.gmra.mrb[0].mxu0 %v1462
        %v1691 = vpop.f32.mrb[0].mxu0
        %v1692 = vadd.f32 0.0, %v1691
        %v1693 = vpop.f32.mrb[0].mxu0
        %v1694 = vpop.f32.mrb[0].mxu0
        %v1695 = vadd.f32 0.0, %v1694
        %v1696 = vpop.f32.mrb[0].mxu0
        %1697 = vmatprep.mubr.bf16.mxu0 %v1479
        %1698 = vmatmul.mubr.bf16.gmra.mrb[0].mxu0 %v1463
        %v1699 = vpop.f32.mrb[0].mxu0
        %v1700 = vadd.f32 0.0, %v1699
        %v1701 = vpop.f32.mrb[0].mxu0
        %v1702 = vpop.f32.mrb[0].mxu0
        %v1703 = vadd.f32 0.0, %v1702
        %v1704 = vpop.f32.mrb[0].mxu0
        %1705 = vmatprep.mubr.bf16.mxu0 %v1480
        %1706 = vmatmul.mubr.bf16.gmra.mrb[0].mxu0 %v1464
        %v1707 = vpop.f32.mrb[0].mxu0
        %v1708 = vadd.f32 0.0, %v1707
        %v1709 = vpop.f32.mrb[0].mxu0
        %v1710 = vpop.f32.mrb[0].mxu0
        %v1711 = vadd.f32 0.0, %v1710
        %v1712 = vpop.f32.mrb[0].mxu0
        %1713 = vmatprep.mubr.bf16.mxu0 %v1481
        %1714 = vmatmul.mubr.bf16.gmra.mrb[0].mxu0 %v1465
        %v1715 = vpop.f32.mrb[0].mxu0
        %v1716 = vadd.f32 0.0, %v1715
        %v1717 = vpop.f32.mrb[0].mxu0
        %v1718 = vpop.f32.mrb[0].mxu0
        %v1719 = vadd.f32 0.0, %v1718
        %v1720 = vpop.f32.mrb[0].mxu0
        %1721 = vmatprep.mubr.bf16.mxu0 %v1482
        %1722 = vmatmul.mubr.bf16.gmra.mrb[0].mxu0 %v1466
        %v1723 = vpop.f32.mrb[0].mxu0
        %v1724 = vadd.f32 0.0, %v1723
        %v1725 = vpop.f32.mrb[0].mxu0
        %v1726 = vpop.f32.mrb[0].mxu0
        %v1727 = vadd.f32 0.0, %v1726
        %v1728 = vpop.f32.mrb[0].mxu0
        %1729 = vmatprep.mubr.bf16.mxu0 %v1483
        %1730 = vmatmul.mubr.bf16.gmra.mrb[0].mxu0 %v1467
        %v1731 = vpop.f32.mrb[0].mxu0
        %v1732 = vadd.f32 0.0, %v1731
        %v1733 = vpop.f32.mrb[0].mxu0
        %v1734 = vpop.f32.mrb[0].mxu0
        %v1735 = vadd.f32 0.0, %v1734
        %v1736 = vpop.f32.mrb[0].mxu0
        %1737 = vmatprep.mubr.bf16.mxu0 %v1484
        %1738 = vmatmul.mubr.bf16.gmra.mrb[0].mxu0 %v1468
        %v1739 = vpop.f32.mrb[0].mxu0
        %v1740 = vadd.f32 0.0, %v1739
        %v1741 = vpop.f32.mrb[0].mxu0
        %v1742 = vpop.f32.mrb[0].mxu0
        %v1743 = vadd.f32 0.0, %v1742
        %v1744 = vpop.f32.mrb[0].mxu0
        %1745 = vmatprep.mubr.bf16.mxu0 %v1485
        %1746 = vmatmul.mubr.bf16.gmra.mrb[0].mxu0 %v1469
        %v1747 = vpop.f32.mrb[0].mxu0
        %v1748 = vadd.f32 0.0, %v1747
        %v1749 = vpop.f32.mrb[0].mxu0
        %v1750 = vpop.f32.mrb[0].mxu0
        %v1751 = vadd.f32 0.0, %v1750
        %v1752 = vpop.f32.mrb[0].mxu0
        %1753 = vmatprep.mubr.bf16.mxu0 %v1486
        %1754 = vmatmul.mubr.bf16.gmra.mrb[0].mxu0 %v1470
        %v1755 = vpop.f32.mrb[0].mxu0
        %v1756 = vadd.f32 0.0, %v1755
        %v1757 = vpop.f32.mrb[0].mxu0
        %v1758 = vpop.f32.mrb[0].mxu0
        %v1759 = vadd.f32 0.0, %v1758
        %v1760 = vpop.f32.mrb[0].mxu0
        %1761 = vmatprep.mubr.bf16.mxu0 %v1487
        %1762 = vmatmul.mubr.bf16.gmra.mrb[0].mxu0 %v1471
        %v1763 = vpop.f32.mrb[0].mxu0
        %v1764 = vadd.f32 0.0, %v1763
        %v1765 = vpop.f32.mrb[0].mxu0
        %v1766 = vpop.f32.mrb[0].mxu0
        %v1767 = vadd.f32 0.0, %v1766
        %v1768 = vpop.f32.mrb[0].mxu0
        %1769 = vmatprep.mubr.bf16.mxu0 %v1488
        %1770 = vmatmul.mubr.bf16.gmra.mrb[0].mxu0 %v1472
        %v1771 = vpop.f32.mrb[0].mxu0
        %v1772 = vadd.f32 0.0, %v1771
        %v1773 = vpop.f32.mrb[0].mxu0
        %v1774 = vpop.f32.mrb[0].mxu0
        %v1775 = vadd.f32 0.0, %v1774
        %v1776 = vpop.f32.mrb[0].mxu0
        %1777 = vdwg.mxu0
        %v1778 = vpack.c.bf16 %v1655, %v1652
        %v1779 = vpack.c.bf16 %v1663, %v1660
        %v1780 = vpack.c.bf16 %v1671, %v1668
        %v1781 = vpack.c.bf16 %v1679, %v1676
        %v1782 = vpack.c.bf16 %v1687, %v1684
        %v1783 = vpack.c.bf16 %v1695, %v1692
        %v1784 = vpack.c.bf16 %v1703, %v1700
        %v1785 = vpack.c.bf16 %v1711, %v1708
        %v1786 = vpack.c.bf16 %v1719, %v1716
        %v1787 = vpack.c.bf16 %v1727, %v1724
        %v1788 = vpack.c.bf16 %v1735, %v1732
        %v1789 = vpack.c.bf16 %v1743, %v1740
        %v1790 = vpack.c.bf16 %v1751, %v1748
        %v1791 = vpack.c.bf16 %v1759, %v1756
        %v1792 = vpack.c.bf16 %v1767, %v1764
        %v1793 = vpack.c.bf16 %v1775, %v1772
        %v1794 = vld [vmem:[%s4 + $0x2] sm:$0x1]
        %v1795 = vpack.c.bf16 %v1794, %v1794
        %v1797 = vpack.i.b16 %v1795, %v1795
        %v1799 = vlaneseq
        %v1800 = vshrl.u32 %v1799, 7
        %v1801 = vsub.s32 0, %v1800
        %v1802 = vrot.slane %v1797, %v1801
        %v1803 = vadd.bf16 %v1778, %v1802
        %v1804 = vadd.bf16 %v1779, %v1802
        %v1805 = vadd.bf16 %v1780, %v1802
        %v1806 = vadd.bf16 %v1781, %v1802
        %v1807 = vadd.bf16 %v1782, %v1802
        %v1808 = vadd.bf16 %v1783, %v1802
        %v1809 = vadd.bf16 %v1784, %v1802
        %v1810 = vadd.bf16 %v1785, %v1802
        %v1811 = vadd.bf16 %v1786, %v1802
        %v1812 = vadd.bf16 %v1787, %v1802
        %v1813 = vadd.bf16 %v1788, %v1802
        %v1814 = vadd.bf16 %v1789, %v1802
        %v1815 = vadd.bf16 %v1790, %v1802
        %v1816 = vadd.bf16 %v1791, %v1802
        %v1817 = vadd.bf16 %v1792, %v1802
        %v1818 = vadd.bf16 %v1793, %v1802
        %v1819 = vmax.bf16 %v1803, 0
        %v1820 = vmax.bf16 %v1804, 0
        %v1821 = vmax.bf16 %v1805, 0
        %v1822 = vmax.bf16 %v1806, 0
        %v1823 = vmax.bf16 %v1807, 0
        %v1824 = vmax.bf16 %v1808, 0
        %v1825 = vmax.bf16 %v1809, 0
        %v1826 = vmax.bf16 %v1810, 0
        %v1827 = vmax.bf16 %v1811, 0
        %v1828 = vmax.bf16 %v1812, 0
        %v1829 = vmax.bf16 %v1813, 0
        %v1830 = vmax.bf16 %v1814, 0
        %v1831 = vmax.bf16 %v1815, 0
        %v1832 = vmax.bf16 %v1816, 0
        %v1833 = vmax.bf16 %v1817, 0
        %v1834 = vmax.bf16 %v1818, 0
        %s1835 = scalar_lea.vmem [#allocation7], 128
        %v1836 = vld [vmem:[%s1835] sm:$0xf]
        %v1837 = vld [vmem:[%s1835 + $0x4] sm:$0xf]
        %v1838 = vld [vmem:[%s1835 + $0x8] sm:$0xf]
        %v1839 = vld [vmem:[%s1835 + $0xc] sm:$0xf]
        %v1840 = vld [vmem:[%s1835 + $0x10] sm:$0xf]
        %v1841 = vld [vmem:[%s1835 + $0x14] sm:$0xf]
        %v1842 = vld [vmem:[%s1835 + $0x18] sm:$0xf]
        %v1843 = vld [vmem:[%s1835 + $0x1c] sm:$0xf]
        %v1844 = vld [vmem:[%s1835 + $0x20] sm:$0xf]
        %v1845 = vld [vmem:[%s1835 + $0x24] sm:$0xf]
        %v1846 = vld [vmem:[%s1835 + $0x28] sm:$0xf]
        %v1847 = vld [vmem:[%s1835 + $0x2c] sm:$0xf]
        %v1848 = vld [vmem:[%s1835 + $0x30] sm:$0xf]
        %v1849 = vld [vmem:[%s1835 + $0x34] sm:$0xf]
        %v1850 = vld [vmem:[%s1835 + $0x38] sm:$0xf]
        %v1851 = vld [vmem:[%s1835 + $0x3c] sm:$0xf]
        %v1868 = vunpack.c.l.b16 %v1836
        %v1869 = vunpack.c.l.b16 %v1837
        %v1870 = vunpack.c.l.b16 %v1838
        %v1871 = vunpack.c.l.b16 %v1839
        %v1872 = vunpack.c.l.b16 %v1840
        %v1873 = vunpack.c.l.b16 %v1841
        %v1874 = vunpack.c.l.b16 %v1842
        %v1875 = vunpack.c.l.b16 %v1843
        %v1876 = vunpack.c.l.b16 %v1844
        %v1877 = vunpack.c.l.b16 %v1845
        %v1878 = vunpack.c.l.b16 %v1846
        %v1879 = vunpack.c.l.b16 %v1847
        %v1880 = vunpack.c.l.b16 %v1848
        %v1881 = vunpack.c.l.b16 %v1849
        %v1882 = vunpack.c.l.b16 %v1850
        %v1883 = vunpack.c.l.b16 %v1851
        %v1884 = vpack.c.b16 %v1869, %v1868
        %v1885 = vpack.c.b16 %v1871, %v1870
        %v1886 = vpack.c.b16 %v1873, %v1872
        %v1887 = vpack.c.b16 %v1875, %v1874
        %v1888 = vpack.c.b16 %v1877, %v1876
        %v1889 = vpack.c.b16 %v1879, %v1878
        %v1890 = vpack.c.b16 %v1881, %v1880
        %v1891 = vpack.c.b16 %v1883, %v1882
        %1900 = vmatprep.subr.bf16.mxu0 0
        %1901 = vmatpush1.bf16.msra.mxu0 %v1884
        %1902 = vmatprep.subr.bf16.mxu0 0
        %1903 = vmatpush1.bf16.msra.mxu0 %v1885
        %1904 = vmatprep.subr.bf16.mxu0 0
        %1905 = vmatpush1.bf16.msra.mxu0 %v1886
        %1906 = vmatprep.subr.bf16.mxu0 0
        %1907 = vmatpush1.bf16.msra.mxu0 %v1887
        %1908 = vmatprep.subr.bf16.mxu0 0
        %1909 = vmatpush1.bf16.msra.mxu0 %v1888
        %1910 = vmatprep.subr.bf16.mxu0 0
        %1911 = vmatpush1.bf16.msra.mxu0 %v1889
        %1912 = vmatprep.subr.bf16.mxu0 0
        %1913 = vmatpush1.bf16.msra.mxu0 %v1890
        %1914 = vmatprep.subr.bf16.mxu0 0
        %1915 = vmatpush1.bf16.msra.mxu0 %v1891
        %1916 = vmatprep.subr.bf16.mxu0 0
        %1917 = vmatpush1.bf16.msra.mxu0 0
        %1918 = vmatprep.subr.bf16.mxu0 0
        %1919 = vmatpush1.bf16.msra.mxu0 0
        %1920 = vmatprep.subr.bf16.mxu0 0
        %1921 = vmatpush1.bf16.msra.mxu0 0
        %1922 = vmatprep.subr.bf16.mxu0 0
        %1923 = vmatpush1.bf16.msra.mxu0 0
        %1924 = vmatprep.subr.bf16.mxu0 0
        %1925 = vmatpush1.bf16.msra.mxu0 0
        %1926 = vmatprep.subr.bf16.mxu0 0
        %1927 = vmatpush1.bf16.msra.mxu0 0
        %1928 = vmatprep.subr.bf16.mxu0 0
        %1929 = vmatpush1.bf16.msra.mxu0 0
        %1930 = vmatprep.subr.bf16.mxu0 0
        %1931 = vmatpush1.bf16.msra.mxu0 0
        %1932 = vmatprep.mubr.bf16.mxu0 0
        %1933 = vmatmul.mubr.bf16.gmra.mrb[0].mxu0 %v1819
        %v1934 = vpop.f32.mrb[0].mxu0
        %v1935 = vadd.f32 0.0, %v1934
        %v1936 = vpop.f32.mrb[0].mxu0
        %v1937 = vpop.f32.mrb[0].mxu0
        %v1938 = vadd.f32 0.0, %v1937
        %v1939 = vpop.f32.mrb[0].mxu0
        %1940 = vmatprep.mubr.bf16.mxu0 0
        %1941 = vmatmul.mubr.bf16.gmra.mrb[0].mxu0 %v1820
        %v1942 = vpop.f32.mrb[0].mxu0
        %v1943 = vadd.f32 0.0, %v1942
        %v1944 = vpop.f32.mrb[0].mxu0
        %v1945 = vpop.f32.mrb[0].mxu0
        %v1946 = vadd.f32 0.0, %v1945
        %v1947 = vpop.f32.mrb[0].mxu0
        %1948 = vmatprep.mubr.bf16.mxu0 0
        %1949 = vmatmul.mubr.bf16.gmra.mrb[0].mxu0 %v1821
        %v1950 = vpop.f32.mrb[0].mxu0
        %v1951 = vadd.f32 0.0, %v1950
        %v1952 = vpop.f32.mrb[0].mxu0
        %v1953 = vpop.f32.mrb[0].mxu0
        %v1954 = vadd.f32 0.0, %v1953
        %v1955 = vpop.f32.mrb[0].mxu0
        %1956 = vmatprep.mubr.bf16.mxu0 0
        %1957 = vmatmul.mubr.bf16.gmra.mrb[0].mxu0 %v1822
        %v1958 = vpop.f32.mrb[0].mxu0
        %v1959 = vadd.f32 0.0, %v1958
        %v1960 = vpop.f32.mrb[0].mxu0
        %v1961 = vpop.f32.mrb[0].mxu0
        %v1962 = vadd.f32 0.0, %v1961
        %v1963 = vpop.f32.mrb[0].mxu0
        %1964 = vmatprep.mubr.bf16.mxu0 0
        %1965 = vmatmul.mubr.bf16.gmra.mrb[0].mxu0 %v1823
        %v1966 = vpop.f32.mrb[0].mxu0
        %v1967 = vadd.f32 0.0, %v1966
        %v1968 = vpop.f32.mrb[0].mxu0
        %v1969 = vpop.f32.mrb[0].mxu0
        %v1970 = vadd.f32 0.0, %v1969
        %v1971 = vpop.f32.mrb[0].mxu0
        %1972 = vmatprep.mubr.bf16.mxu0 0
        %1973 = vmatmul.mubr.bf16.gmra.mrb[0].mxu0 %v1824
        %v1974 = vpop.f32.mrb[0].mxu0
        %v1975 = vadd.f32 0.0, %v1974
        %v1976 = vpop.f32.mrb[0].mxu0
        %v1977 = vpop.f32.mrb[0].mxu0
        %v1978 = vadd.f32 0.0, %v1977
        %v1979 = vpop.f32.mrb[0].mxu0
        %1980 = vmatprep.mubr.bf16.mxu0 0
        %1981 = vmatmul.mubr.bf16.gmra.mrb[0].mxu0 %v1825
        %v1982 = vpop.f32.mrb[0].mxu0
        %v1983 = vadd.f32 0.0, %v1982
        %v1984 = vpop.f32.mrb[0].mxu0
        %v1985 = vpop.f32.mrb[0].mxu0
        %v1986 = vadd.f32 0.0, %v1985
        %v1987 = vpop.f32.mrb[0].mxu0
        %1988 = vmatprep.mubr.bf16.mxu0 0
        %1989 = vmatmul.mubr.bf16.gmra.mrb[0].mxu0 %v1826
        %v1990 = vpop.f32.mrb[0].mxu0
        %v1991 = vadd.f32 0.0, %v1990
        %v1992 = vpop.f32.mrb[0].mxu0
        %v1993 = vpop.f32.mrb[0].mxu0
        %v1994 = vadd.f32 0.0, %v1993
        %v1995 = vpop.f32.mrb[0].mxu0
        %1996 = vmatprep.mubr.bf16.mxu0 0
        %1997 = vmatmul.mubr.bf16.gmra.mrb[0].mxu0 %v1827
        %v1998 = vpop.f32.mrb[0].mxu0
        %v1999 = vadd.f32 0.0, %v1998
        %v2000 = vpop.f32.mrb[0].mxu0
        %v2001 = vpop.f32.mrb[0].mxu0
        %v2002 = vadd.f32 0.0, %v2001
        %v2003 = vpop.f32.mrb[0].mxu0
        %2004 = vmatprep.mubr.bf16.mxu0 0
        %2005 = vmatmul.mubr.bf16.gmra.mrb[0].mxu0 %v1828
        %v2006 = vpop.f32.mrb[0].mxu0
        %v2007 = vadd.f32 0.0, %v2006
        %v2008 = vpop.f32.mrb[0].mxu0
        %v2009 = vpop.f32.mrb[0].mxu0
        %v2010 = vadd.f32 0.0, %v2009
        %v2011 = vpop.f32.mrb[0].mxu0
        %2012 = vmatprep.mubr.bf16.mxu0 0
        %2013 = vmatmul.mubr.bf16.gmra.mrb[0].mxu0 %v1829
        %v2014 = vpop.f32.mrb[0].mxu0
        %v2015 = vadd.f32 0.0, %v2014
        %v2016 = vpop.f32.mrb[0].mxu0
        %v2017 = vpop.f32.mrb[0].mxu0
        %v2018 = vadd.f32 0.0, %v2017
        %v2019 = vpop.f32.mrb[0].mxu0
        %2020 = vmatprep.mubr.bf16.mxu0 0
        %2021 = vmatmul.mubr.bf16.gmra.mrb[0].mxu0 %v1830
        %v2022 = vpop.f32.mrb[0].mxu0
        %v2023 = vadd.f32 0.0, %v2022
        %v2024 = vpop.f32.mrb[0].mxu0
        %v2025 = vpop.f32.mrb[0].mxu0
        %v2026 = vadd.f32 0.0, %v2025
        %v2027 = vpop.f32.mrb[0].mxu0
        %2028 = vmatprep.mubr.bf16.mxu0 0
        %2029 = vmatmul.mubr.bf16.gmra.mrb[0].mxu0 %v1831
        %v2030 = vpop.f32.mrb[0].mxu0
        %v2031 = vadd.f32 0.0, %v2030
        %v2032 = vpop.f32.mrb[0].mxu0
        %v2033 = vpop.f32.mrb[0].mxu0
        %v2034 = vadd.f32 0.0, %v2033
        %v2035 = vpop.f32.mrb[0].mxu0
        %2036 = vmatprep.mubr.bf16.mxu0 0
        %2037 = vmatmul.mubr.bf16.gmra.mrb[0].mxu0 %v1832
        %v2038 = vpop.f32.mrb[0].mxu0
        %v2039 = vadd.f32 0.0, %v2038
        %v2040 = vpop.f32.mrb[0].mxu0
        %v2041 = vpop.f32.mrb[0].mxu0
        %v2042 = vadd.f32 0.0, %v2041
        %v2043 = vpop.f32.mrb[0].mxu0
        %2044 = vmatprep.mubr.bf16.mxu0 0
        %2045 = vmatmul.mubr.bf16.gmra.mrb[0].mxu0 %v1833
        %v2046 = vpop.f32.mrb[0].mxu0
        %v2047 = vadd.f32 0.0, %v2046
        %v2048 = vpop.f32.mrb[0].mxu0
        %v2049 = vpop.f32.mrb[0].mxu0
        %v2050 = vadd.f32 0.0, %v2049
        %v2051 = vpop.f32.mrb[0].mxu0
        %2052 = vmatprep.mubr.bf16.mxu0 0
        %2053 = vmatmul.mubr.bf16.gmra.mrb[0].mxu0 %v1834
        %v2054 = vpop.f32.mrb[0].mxu0
        %v2055 = vadd.f32 0.0, %v2054
        %v2056 = vpop.f32.mrb[0].mxu0
        %v2057 = vpop.f32.mrb[0].mxu0
        %v2058 = vadd.f32 0.0, %v2057
        %v2059 = vpop.f32.mrb[0].mxu0
        %2060 = vdwg.mxu0
        %v2061 = vpack.c.bf16 %v1938, %v1935
        %v2062 = vpack.c.bf16 %v1946, %v1943
        %v2063 = vpack.c.bf16 %v1954, %v1951
        %v2064 = vpack.c.bf16 %v1962, %v1959
        %v2065 = vpack.c.bf16 %v1970, %v1967
        %v2066 = vpack.c.bf16 %v1978, %v1975
        %v2067 = vpack.c.bf16 %v1986, %v1983
        %v2068 = vpack.c.bf16 %v1994, %v1991
        %v2069 = vpack.c.bf16 %v2002, %v1999
        %v2070 = vpack.c.bf16 %v2010, %v2007
        %v2071 = vpack.c.bf16 %v2018, %v2015
        %v2072 = vpack.c.bf16 %v2026, %v2023
        %v2073 = vpack.c.bf16 %v2034, %v2031
        %v2074 = vpack.c.bf16 %v2042, %v2039
        %v2075 = vpack.c.bf16 %v2050, %v2047
        %v2076 = vpack.c.bf16 %v2058, %v2055
        %v2077 = vld [vmem:[%s4 + $0x3] sm:$0x1]
        %v2078 = vpack.c.bf16 %v2077, %v2077
        %v2080 = vpack.i.b16 %v2078, %v2078
        %v2082 = vlaneseq
        %v2083 = vshrl.u32 %v2082, 7
        %v2084 = vsub.s32 0, %v2083
        %v2085 = vrot.slane %v2080, %v2084
        %v2086 = vadd.bf16 %v2061, %v2085
        %v2087 = vadd.bf16 %v2062, %v2085
        %v2088 = vadd.bf16 %v2063, %v2085
        %v2089 = vadd.bf16 %v2064, %v2085
        %v2090 = vadd.bf16 %v2065, %v2085
        %v2091 = vadd.bf16 %v2066, %v2085
        %v2092 = vadd.bf16 %v2067, %v2085
        %v2093 = vadd.bf16 %v2068, %v2085
        %v2094 = vadd.bf16 %v2069, %v2085
        %v2095 = vadd.bf16 %v2070, %v2085
        %v2096 = vadd.bf16 %v2071, %v2085
        %v2097 = vadd.bf16 %v2072, %v2085
        %v2098 = vadd.bf16 %v2073, %v2085
        %v2099 = vadd.bf16 %v2074, %v2085
        %v2100 = vadd.bf16 %v2075, %v2085
        %v2101 = vadd.bf16 %v2076, %v2085
        %v2102 = vmax.bf16 %v2086, 0
        %v2103 = vmax.bf16 %v2087, 0
        %v2104 = vmax.bf16 %v2088, 0
        %v2105 = vmax.bf16 %v2089, 0
        %v2106 = vmax.bf16 %v2090, 0
        %v2107 = vmax.bf16 %v2091, 0
        %v2108 = vmax.bf16 %v2092, 0
        %v2109 = vmax.bf16 %v2093, 0
        %v2110 = vmax.bf16 %v2094, 0
        %v2111 = vmax.bf16 %v2095, 0
        %v2112 = vmax.bf16 %v2096, 0
        %v2113 = vmax.bf16 %v2097, 0
        %v2114 = vmax.bf16 %v2098, 0
        %v2115 = vmax.bf16 %v2099, 0
        %v2116 = vmax.bf16 %v2100, 0
        %v2117 = vmax.bf16 %v2101, 0
        %s2118 = scalar_lea.vmem [#allocation7], 192
        %v2119 = vld [vmem:[%s2118] sm:$0xf]
        %v2120 = vld [vmem:[%s2118 + $0x4] sm:$0xf]
        %v2121 = vld [vmem:[%s2118 + $0x8] sm:$0xf]
        %v2122 = vld [vmem:[%s2118 + $0xc] sm:$0xf]
        %v2123 = vld [vmem:[%s2118 + $0x10] sm:$0xf]
        %v2124 = vld [vmem:[%s2118 + $0x14] sm:$0xf]
        %v2125 = vld [vmem:[%s2118 + $0x18] sm:$0xf]
        %v2126 = vld [vmem:[%s2118 + $0x1c] sm:$0xf]
        %v2127 = vld [vmem:[%s2118 + $0x20] sm:$0xf]
        %v2128 = vld [vmem:[%s2118 + $0x24] sm:$0xf]
        %v2129 = vld [vmem:[%s2118 + $0x28] sm:$0xf]
        %v2130 = vld [vmem:[%s2118 + $0x2c] sm:$0xf]
        %v2131 = vld [vmem:[%s2118 + $0x30] sm:$0xf]
        %v2132 = vld [vmem:[%s2118 + $0x34] sm:$0xf]
        %v2133 = vld [vmem:[%s2118 + $0x38] sm:$0xf]
        %v2134 = vld [vmem:[%s2118 + $0x3c] sm:$0xf]
        %v2135 = vld [vmem:[%s4 + $0x4] sm:$0x1]
        %v2136 = vlaneseq
        %v2137 = vshrl.u32 %v2136, 7
        %v2138 = vsub.s32 0, %v2137
        %v2139 = vrot.slane %v2135, %v2138
        %v2156 = vunpack.c.l.b16 %v2119
        %v2157 = vunpack.c.l.b16 %v2120
        %v2158 = vunpack.c.l.b16 %v2121
        %v2159 = vunpack.c.l.b16 %v2122
        %v2160 = vunpack.c.l.b16 %v2123
        %v2161 = vunpack.c.l.b16 %v2124
        %v2162 = vunpack.c.l.b16 %v2125
        %v2163 = vunpack.c.l.b16 %v2126
        %v2164 = vunpack.c.l.b16 %v2127
        %v2165 = vunpack.c.l.b16 %v2128
        %v2166 = vunpack.c.l.b16 %v2129
        %v2167 = vunpack.c.l.b16 %v2130
        %v2168 = vunpack.c.l.b16 %v2131
        %v2169 = vunpack.c.l.b16 %v2132
        %v2170 = vunpack.c.l.b16 %v2133
        %v2171 = vunpack.c.l.b16 %v2134
        %v2172 = vpack.c.b16 %v2157, %v2156
        %v2173 = vpack.c.b16 %v2159, %v2158
        %v2174 = vpack.c.b16 %v2161, %v2160
        %v2175 = vpack.c.b16 %v2163, %v2162
        %v2176 = vpack.c.b16 %v2165, %v2164
        %v2177 = vpack.c.b16 %v2167, %v2166
        %v2178 = vpack.c.b16 %v2169, %v2168
        %v2179 = vpack.c.b16 %v2171, %v2170
        %2188 = vmatprep.subr.bf16.mxu0 0
        %2189 = vmatpush1.bf16.msra.mxu0 %v2172
        %2190 = vmatprep.subr.bf16.mxu0 0
        %2191 = vmatpush1.bf16.msra.mxu0 %v2173
        %2192 = vmatprep.subr.bf16.mxu0 0
        %2193 = vmatpush1.bf16.msra.mxu0 %v2174
        %2194 = vmatprep.subr.bf16.mxu0 0
        %2195 = vmatpush1.bf16.msra.mxu0 %v2175
        %2196 = vmatprep.subr.bf16.mxu0 0
        %2197 = vmatpush1.bf16.msra.mxu0 %v2176
        %2198 = vmatprep.subr.bf16.mxu0 0
        %2199 = vmatpush1.bf16.msra.mxu0 %v2177
        %2200 = vmatprep.subr.bf16.mxu0 0
        %2201 = vmatpush1.bf16.msra.mxu0 %v2178
        %2202 = vmatprep.subr.bf16.mxu0 0
        %2203 = vmatpush1.bf16.msra.mxu0 %v2179
        %2204 = vmatprep.subr.bf16.mxu0 0
        %2205 = vmatpush1.bf16.msra.mxu0 0
        %2206 = vmatprep.subr.bf16.mxu0 0
        %2207 = vmatpush1.bf16.msra.mxu0 0
        %2208 = vmatprep.subr.bf16.mxu0 0
        %2209 = vmatpush1.bf16.msra.mxu0 0
        %2210 = vmatprep.subr.bf16.mxu0 0
        %2211 = vmatpush1.bf16.msra.mxu0 0
        %2212 = vmatprep.subr.bf16.mxu0 0
        %2213 = vmatpush1.bf16.msra.mxu0 0
        %2214 = vmatprep.subr.bf16.mxu0 0
        %2215 = vmatpush1.bf16.msra.mxu0 0
        %2216 = vmatprep.subr.bf16.mxu0 0
        %2217 = vmatpush1.bf16.msra.mxu0 0
        %2218 = vmatprep.subr.bf16.mxu0 0
        %2219 = vmatpush1.bf16.msra.mxu0 0
        %2220 = vmatprep.mubr.bf16.mxu0 0
        %2221 = vmatmul.mubr.bf16.gmra.mrb[0].mxu0 %v2102
        %v2222 = vpop.f32.mrb[0].mxu0
        %v2223 = vadd.f32 %v2139, %v2222
        %v2224 = vpop.f32.mrb[0].mxu0
        %v2225 = vpop.f32.mrb[0].mxu0
        %v2226 = vadd.f32 %v2139, %v2225
        %v2227 = vpop.f32.mrb[0].mxu0
        %2228 = vmatprep.mubr.bf16.mxu0 0
        %2229 = vmatmul.mubr.bf16.gmra.mrb[0].mxu0 %v2103
        %v2230 = vpop.f32.mrb[0].mxu0
        %v2231 = vadd.f32 %v2139, %v2230
        %v2232 = vpop.f32.mrb[0].mxu0
        %v2233 = vpop.f32.mrb[0].mxu0
        %v2234 = vadd.f32 %v2139, %v2233
        %v2235 = vpop.f32.mrb[0].mxu0
        %2236 = vmatprep.mubr.bf16.mxu0 0
        %2237 = vmatmul.mubr.bf16.gmra.mrb[0].mxu0 %v2104
        %v2238 = vpop.f32.mrb[0].mxu0
        %v2239 = vadd.f32 %v2139, %v2238
        %v2240 = vpop.f32.mrb[0].mxu0
        %v2241 = vpop.f32.mrb[0].mxu0
        %v2242 = vadd.f32 %v2139, %v2241
        %v2243 = vpop.f32.mrb[0].mxu0
        %2244 = vmatprep.mubr.bf16.mxu0 0
        %2245 = vmatmul.mubr.bf16.gmra.mrb[0].mxu0 %v2105
        %v2246 = vpop.f32.mrb[0].mxu0
        %v2247 = vadd.f32 %v2139, %v2246
        %v2248 = vpop.f32.mrb[0].mxu0
        %v2249 = vpop.f32.mrb[0].mxu0
        %v2250 = vadd.f32 %v2139, %v2249
        %v2251 = vpop.f32.mrb[0].mxu0
        %2252 = vmatprep.mubr.bf16.mxu0 0
        %2253 = vmatmul.mubr.bf16.gmra.mrb[0].mxu0 %v2106
        %v2254 = vpop.f32.mrb[0].mxu0
        %v2255 = vadd.f32 %v2139, %v2254
        %v2256 = vpop.f32.mrb[0].mxu0
        %v2257 = vpop.f32.mrb[0].mxu0
        %v2258 = vadd.f32 %v2139, %v2257
        %v2259 = vpop.f32.mrb[0].mxu0
        %2260 = vmatprep.mubr.bf16.mxu0 0
        %2261 = vmatmul.mubr.bf16.gmra.mrb[0].mxu0 %v2107
        %v2262 = vpop.f32.mrb[0].mxu0
        %v2263 = vadd.f32 %v2139, %v2262
        %v2264 = vpop.f32.mrb[0].mxu0
        %v2265 = vpop.f32.mrb[0].mxu0
        %v2266 = vadd.f32 %v2139, %v2265
        %v2267 = vpop.f32.mrb[0].mxu0
        %2268 = vmatprep.mubr.bf16.mxu0 0
        %2269 = vmatmul.mubr.bf16.gmra.mrb[0].mxu0 %v2108
        %v2270 = vpop.f32.mrb[0].mxu0
        %v2271 = vadd.f32 %v2139, %v2270
        %v2272 = vpop.f32.mrb[0].mxu0
        %v2273 = vpop.f32.mrb[0].mxu0
        %v2274 = vadd.f32 %v2139, %v2273
        %v2275 = vpop.f32.mrb[0].mxu0
        %2276 = vmatprep.mubr.bf16.mxu0 0
        %2277 = vmatmul.mubr.bf16.gmra.mrb[0].mxu0 %v2109
        %v2278 = vpop.f32.mrb[0].mxu0
        %v2279 = vadd.f32 %v2139, %v2278
        %v2280 = vpop.f32.mrb[0].mxu0
        %v2281 = vpop.f32.mrb[0].mxu0
        %v2282 = vadd.f32 %v2139, %v2281
        %v2283 = vpop.f32.mrb[0].mxu0
        %2284 = vmatprep.mubr.bf16.mxu0 0
        %2285 = vmatmul.mubr.bf16.gmra.mrb[0].mxu0 %v2110
        %v2286 = vpop.f32.mrb[0].mxu0
        %v2287 = vadd.f32 %v2139, %v2286
        %v2288 = vpop.f32.mrb[0].mxu0
        %v2289 = vpop.f32.mrb[0].mxu0
        %v2290 = vadd.f32 %v2139, %v2289
        %v2291 = vpop.f32.mrb[0].mxu0
        %2292 = vmatprep.mubr.bf16.mxu0 0
        %2293 = vmatmul.mubr.bf16.gmra.mrb[0].mxu0 %v2111
        %v2294 = vpop.f32.mrb[0].mxu0
        %v2295 = vadd.f32 %v2139, %v2294
        %v2296 = vpop.f32.mrb[0].mxu0
        %v2297 = vpop.f32.mrb[0].mxu0
        %v2298 = vadd.f32 %v2139, %v2297
        %v2299 = vpop.f32.mrb[0].mxu0
        %2300 = vmatprep.mubr.bf16.mxu0 0
        %2301 = vmatmul.mubr.bf16.gmra.mrb[0].mxu0 %v2112
        %v2302 = vpop.f32.mrb[0].mxu0
        %v2303 = vadd.f32 %v2139, %v2302
        %v2304 = vpop.f32.mrb[0].mxu0
        %v2305 = vpop.f32.mrb[0].mxu0
        %v2306 = vadd.f32 %v2139, %v2305
        %v2307 = vpop.f32.mrb[0].mxu0
        %2308 = vmatprep.mubr.bf16.mxu0 0
        %2309 = vmatmul.mubr.bf16.gmra.mrb[0].mxu0 %v2113
        %v2310 = vpop.f32.mrb[0].mxu0
        %v2311 = vadd.f32 %v2139, %v2310
        %v2312 = vpop.f32.mrb[0].mxu0
        %v2313 = vpop.f32.mrb[0].mxu0
        %v2314 = vadd.f32 %v2139, %v2313
        %v2315 = vpop.f32.mrb[0].mxu0
        %2316 = vmatprep.mubr.bf16.mxu0 0
        %2317 = vmatmul.mubr.bf16.gmra.mrb[0].mxu0 %v2114
        %v2318 = vpop.f32.mrb[0].mxu0
        %v2319 = vadd.f32 %v2139, %v2318
        %v2320 = vpop.f32.mrb[0].mxu0
        %v2321 = vpop.f32.mrb[0].mxu0
        %v2322 = vadd.f32 %v2139, %v2321
        %v2323 = vpop.f32.mrb[0].mxu0
        %2324 = vmatprep.mubr.bf16.mxu0 0
        %2325 = vmatmul.mubr.bf16.gmra.mrb[0].mxu0 %v2115
        %v2326 = vpop.f32.mrb[0].mxu0
        %v2327 = vadd.f32 %v2139, %v2326
        %v2328 = vpop.f32.mrb[0].mxu0
        %v2329 = vpop.f32.mrb[0].mxu0
        %v2330 = vadd.f32 %v2139, %v2329
        %v2331 = vpop.f32.mrb[0].mxu0
        %2332 = vmatprep.mubr.bf16.mxu0 0
        %2333 = vmatmul.mubr.bf16.gmra.mrb[0].mxu0 %v2116
        %v2334 = vpop.f32.mrb[0].mxu0
        %v2335 = vadd.f32 %v2139, %v2334
        %v2336 = vpop.f32.mrb[0].mxu0
        %v2337 = vpop.f32.mrb[0].mxu0
        %v2338 = vadd.f32 %v2139, %v2337
        %v2339 = vpop.f32.mrb[0].mxu0
        %2340 = vmatprep.mubr.bf16.mxu0 0
        %2341 = vmatmul.mubr.bf16.gmra.mrb[0].mxu0 %v2117
        %v2342 = vpop.f32.mrb[0].mxu0
        %v2343 = vadd.f32 %v2139, %v2342
        %v2344 = vpop.f32.mrb[0].mxu0
        %v2345 = vpop.f32.mrb[0].mxu0
        %v2346 = vadd.f32 %v2139, %v2345
        %v2347 = vpop.f32.mrb[0].mxu0
        %2348 = vdwg.mxu0
        %2349 = vst [vmem:[%s311] sm:$0xff] %v2223
        %2350 = vst [vmem:[%s311 + $0x8] sm:$0xff] %v2226
        %2351 = vst [vmem:[%s311 + $0x10] sm:$0xff] %v2231
        %2352 = vst [vmem:[%s311 + $0x18] sm:$0xff] %v2234
        %2353 = vst [vmem:[%s311 + $0x20] sm:$0xff] %v2239
        %2354 = vst [vmem:[%s311 + $0x28] sm:$0xff] %v2242
        %2355 = vst [vmem:[%s311 + $0x30] sm:$0xff] %v2247
        %2356 = vst [vmem:[%s311 + $0x38] sm:$0xff] %v2250
        %2357 = vst [vmem:[%s311 + $0x40] sm:$0xff] %v2255
        %2358 = vst [vmem:[%s311 + $0x48] sm:$0xff] %v2258
        %2359 = vst [vmem:[%s311 + $0x50] sm:$0xff] %v2263
        %2360 = vst [vmem:[%s311 + $0x58] sm:$0xff] %v2266
        %2361 = vst [vmem:[%s311 + $0x60] sm:$0xff] %v2271
        %2362 = vst [vmem:[%s311 + $0x68] sm:$0xff] %v2274
        %2363 = vst [vmem:[%s311 + $0x70] sm:$0xff] %v2279
        %2364 = vst [vmem:[%s311 + $0x78] sm:$0xff] %v2282
        %2365 = vst [vmem:[%s311 + $0x80] sm:$0xff] %v2287
        %2366 = vst [vmem:[%s311 + $0x88] sm:$0xff] %v2290
        %2367 = vst [vmem:[%s311 + $0x90] sm:$0xff] %v2295
        %2368 = vst [vmem:[%s311 + $0x98] sm:$0xff] %v2298
        %2369 = vst [vmem:[%s311 + $0xa0] sm:$0xff] %v2303
        %2370 = vst [vmem:[%s311 + $0xa8] sm:$0xff] %v2306
        %2371 = vst [vmem:[%s311 + $0xb0] sm:$0xff] %v2311
        %2372 = vst [vmem:[%s311 + $0xb8] sm:$0xff] %v2314
        %2373 = vst [vmem:[%s311 + $0xc0] sm:$0xff] %v2319
        %2374 = vst [vmem:[%s311 + $0xc8] sm:$0xff] %v2322
        %2375 = vst [vmem:[%s311 + $0xd0] sm:$0xff] %v2327
        %2376 = vst [vmem:[%s311 + $0xd8] sm:$0xff] %v2330
        %2377 = vst [vmem:[%s311 + $0xe0] sm:$0xff] %v2335
        %2378 = vst [vmem:[%s311 + $0xe8] sm:$0xff] %v2338
        %2379 = vst [vmem:[%s311 + $0xf0] sm:$0xff] %v2343
        %2380 = vst [vmem:[%s311 + $0xf8] sm:$0xff] %v2346
        %s2381 = sand.u32 %s149, 1
        %s2382 = scalar_lea.sflag [#allocation4], %s2381
        %s2383 = sand.u32 %s149, 1
        %s2384 = smul.addr %s2383, 256
        %s2385 = scalar_lea.vmem [#allocation10], %s2384
        // Predicated region
        $region57: #{deepchess_forward.1} parent=39 // pred_check
          %p2386 = pneg %p159
        $region58: #{deepchess_forward.1} parent=39 // pred_check_branch
          %2388 = sbr.rel (%p2386) target = $region60
        $region59: #{deepchess_forward.1} parent=39 // pred_region
          %s2389 = smul.u32 32, %s26
          %s2391 = ssub.s32 4096, 4096
          %2392 = vsyncadd %s2382, %s2391
          %s2393 = smul.addr %s2389, 128
          %s2394 = scalar_lea.hbm %s5, %s2393
          %s2395 = sshll.u32 %s2385, 4
          %s2396 = int_to_ptr.vmem [resolvable:$true] %s2395
          %2401 = dma.vmem_to_hbm [thread:$0]  %s2396, 4096, %s2394, %s2382, 128, 128, 8
        $region60: #{deepchess_forward.1} parent=39 // pred_fallthru
          _
      $region40: #{deepchess_forward.1} parent=5 // pred_fallthru
        _
      %p2402 = scmp.le.s32.totalorder 2, %s21
      // Predicated region
      $region61: #{deepchess_forward.1} parent=5 // pred_check
        %p2403 = pneg %p2402
      $region62: #{deepchess_forward.1} parent=5 // pred_check_branch
        %2405 = sbr.rel (%p2403) target = $region64
      $region63: #{deepchess_forward.1} parent=5 // pred_region
        %s2406 = ssub.s32 %s21, 2
        // Predicated region
        $region65: #{deepchess_forward.1} parent=63 // pred_check
          %p2407 = pneg %p165
        $region66: #{deepchess_forward.1} parent=63 // pred_check_branch
          %2409 = sbr.rel (%p2407) target = $region68
        $region67: #{deepchess_forward.1} parent=63 // pred_region
          %s2410 = sand.u32 %s150, 1
          %s2411 = scalar_lea.sflag [#allocation4], %s2410
          %s2412 = sand.u32 %s150, 1
          %s2413 = smul.addr %s2412, 256
          %s2414 = scalar_lea.vmem [#allocation10], %s2413
          %2415 = dma.done %s2411, 4096
        $region68: #{deepchess_forward.1} parent=63 // pred_fallthru
          _
      $region64: #{deepchess_forward.1} parent=5 // pred_fallthru
        _
    $region6: #{deepchess_forward.1} parent=1 // loop_footer
      %s25 = sadd.s32 1, %s21
    $region7: #{deepchess_forward.1} parent=1 // loop_footer_branch
      %20 = sbr.rel target = $region3
    $region8: #{deepchess_forward.1} parent=1 // loop_exit
      _
    %2416 = vsyncpa [#allocation3], 1
    %s2417 = scalar_lea.sflag [#allocation3], 1
    %2418 = vsyncpa %s2417, 1
    %2419 = vsyncpa [#allocation6], 1
    %s2420 = scalar_lea.sflag [#allocation6], 1
    %2421 = vsyncpa %s2420, 1
    %2422 = vsyncpa [#allocation9], 1
    %2423 = vsyncpa [#allocation4], 1
    %s2424 = scalar_lea.sflag [#allocation4], 1
    %2425 = vsyncpa %s2424, 1

</llo_original>
